<compile_context>
chip_gen: v5e
topology: v5e:2x2
jax: 0.10.0
libtpu: 0.0.40
codegen_flags: <defaults>
</compile_context>

<pallas_src>
import math
import jax
import jax.numpy as jnp
from jax.experimental import pallas as pl
from jax.experimental.pallas import tpu as pltpu

LN_EPS = 1e-5


def _round_up(x, m):
    return ((x + m - 1) // m) * m


def _layernorm(x, gamma, beta):
    mu = jnp.mean(x, axis=-1, keepdims=True)
    xc = x - mu
    var = jnp.mean(xc * xc, axis=-1, keepdims=True)
    return xc * jax.lax.rsqrt(var + LN_EPS) * gamma + beta


def _gelu_exact(x):
    # PyTorch F.gelu default: 0.5 * x * (1 + erf(x / sqrt(2)))
    return 0.5 * x * (1.0 + jax.lax.erf(x * (1.0 / math.sqrt(2.0))))


def transformer_mlp_kernel(
    x_ref,
    ln1_g_ref, ln1_b_ref,
    w1_ref, b1_ref,
    w2_ref, b2_ref,
    ln2_g_ref, ln2_b_ref,
    wo_ref, bo_ref,
    o_ref,
    acc_ref,
):
    k = pl.program_id(1)

    x = x_ref[...]  # (row_tile, E) f32

    @pl.when(k == 0)
    def _init():
        acc_ref[...] = jnp.zeros_like(acc_ref)

    # ln1 -> ff1 chunk -> gelu -> ff2 chunk, accumulated over the H axis.
    # Padded H columns contribute exactly zero (w1/b1/w2 padding is zero and
    # gelu(0) == 0), so the accumulation is exact.
    h = _layernorm(x, ln1_g_ref[...], ln1_b_ref[...])
    h = jnp.dot(h.astype(jnp.bfloat16), w1_ref[...],
                preferred_element_type=jnp.float32) + b1_ref[...]
    h = _gelu_exact(h)
    acc_ref[...] += jnp.dot(h.astype(jnp.bfloat16), w2_ref[...],
                            preferred_element_type=jnp.float32)

    @pl.when(k == pl.num_programs(1) - 1)
    def _finalize():
        # ff2 bias + dropout (eval => identity) + residual, then ln2, then the
        # output projection. All in f32 except the MXU operands.
        y = x + acc_ref[...] + b2_ref[...]
        y = _layernorm(y, ln2_g_ref[...], ln2_b_ref[...])
        out = jnp.dot(y.astype(jnp.bfloat16), wo_ref[...],
                      preferred_element_type=jnp.float32) + bo_ref[...]
        o_ref[...] = out.astype(o_ref.dtype)


def transformer_mlp(x, params, *, row_tile=256, h_tile=512):
    """x: (B, S, E) float32. params: dict of weights. Returns (B, S, out_dim)."""
    B, S, E = x.shape
    H = params["w1"].shape[1]
    O = params["wo"].shape[1]
    N = B * S

    # MXU / lane-friendly padded dims.  E stays unpadded (LayerNorm statistics
    # are taken over the true feature axis), which is allowed since the block
    # spans the full E extent.
    row_tile = int(min(row_tile, max(8, _round_up(N, 128))))
    N_pad = _round_up(N, row_tile)
    h_tile = int(min(h_tile, _round_up(H, 128)))
    H_pad = _round_up(H, h_tile)
    O_pad = _round_up(O, 128)

    x2d = x.reshape(N, E)
    if N_pad != N:
        x2d = jnp.pad(x2d, ((0, N_pad - N), (0, 0)))

    def pad2(a, r, c):
        return jnp.pad(a, ((0, r - a.shape[0]), (0, c - a.shape[1])))

    # Weights in bf16 for the MXU (halves VMEM/HBM traffic); biases / LN
    # params stay f32.
    w1 = pad2(params["w1"], E, H_pad).astype(jnp.bfloat16)
    w2 = pad2(params["w2"], H_pad, E).astype(jnp.bfloat16)
    wo = pad2(params["wo"], E, O_pad).astype(jnp.bfloat16)

    b1 = jnp.pad(params["b1"], (0, H_pad - H)).reshape(1, H_pad)
    b2 = params["b2"].reshape(1, E)
    bo = jnp.pad(params["bo"], (0, O_pad - O)).reshape(1, O_pad)
    ln1_g = params["ln1_g"].reshape(1, E)
    ln1_b = params["ln1_b"].reshape(1, E)
    ln2_g = params["ln2_g"].reshape(1, E)
    ln2_b = params["ln2_b"].reshape(1, E)

    grid = (N_pad // row_tile, H_pad // h_tile)
    bcast = lambda shape: pl.BlockSpec(shape, lambda i, k: (0, 0))

    # Rough VMEM footprint (double-buffered tiles + bf16 weight chunks +
    # scratch + live intermediates) with headroom, clamped so it is valid on
    # v5e (16 MiB default scoped limit) and does not exceed v7x's 64 MiB.
    est = (
        2 * (row_tile * E * 4 + row_tile * O_pad * 4
             + (E * h_tile + h_tile * E + E * O_pad) * 2
             + (h_tile + 7 * E + O_pad) * 4)
        + row_tile * E * 4
        + 2 * row_tile * h_tile * 4
    )
    vmem_limit = int(min(max(2 * est, 32 << 20), 64 << 20))

    out2d = pl.pallas_call(
        transformer_mlp_kernel,
        out_shape=jax.ShapeDtypeStruct((N_pad, O_pad), x.dtype),
        grid_spec=pltpu.PrefetchScalarGridSpec(
            num_scalar_prefetch=0,
            grid=grid,
            in_specs=[
                pl.BlockSpec((row_tile, E), lambda i, k: (i, 0)),   # x rows
                bcast((1, E)), bcast((1, E)),                       # ln1 g/b
                pl.BlockSpec((E, h_tile), lambda i, k: (0, k)),     # w1 chunk
                pl.BlockSpec((1, h_tile), lambda i, k: (0, k)),     # b1 chunk
                pl.BlockSpec((h_tile, E), lambda i, k: (k, 0)),     # w2 chunk
                bcast((1, E)),                                      # b2
                bcast((1, E)), bcast((1, E)),                       # ln2 g/b
                pl.BlockSpec((E, O_pad), lambda i, k: (0, 0)),      # wo
                bcast((1, O_pad)),                                  # bo
            ],
            out_specs=pl.BlockSpec((row_tile, O_pad), lambda i, k: (i, 0)),
            scratch_shapes=[pltpu.VMEM((row_tile, E), jnp.float32)],
        ),
        compiler_params=pltpu.CompilerParams(
            dimension_semantics=("parallel", "arbitrary"),
            vmem_limit_bytes=vmem_limit,
        ),
    )(
        x2d,
        ln1_g, ln1_b,
        w1, b1,
        w2, b2,
        ln2_g, ln2_b,
        wo, bo,
    )
    return out2d[:N, :O].reshape(B, S, O)


def init_params(key, emb_dim, h_dim, out_dim):
    """Deterministic synthetic params matching nn.Linear / nn.LayerNorm shapes.

    Weights are stored transposed relative to PyTorch (in_dim, out_dim) so the
    kernel does row-major x @ W."""
    ks = jax.random.split(key, 6)

    def linear(k, fan_in, fan_out):
        bound = 1.0 / math.sqrt(fan_in)
        kw, kb = jax.random.split(k)
        w = jax.random.uniform(kw, (fan_in, fan_out), jnp.float32, -bound, bound)
        b = jax.random.uniform(kb, (fan_out,), jnp.float32, -bound, bound)
        return w, b

    w1, b1 = linear(ks[0], emb_dim, h_dim)
    w2, b2 = linear(ks[1], h_dim, emb_dim)
    wo, bo = linear(ks[2], emb_dim, out_dim)
    return {
        "w1": w1, "b1": b1,
        "w2": w2, "b2": b2,
        "wo": wo, "bo": bo,
        "ln1_g": jnp.ones((emb_dim,), jnp.float32),
        "ln1_b": jnp.zeros((emb_dim,), jnp.float32),
        "ln2_g": jnp.ones((emb_dim,), jnp.float32),
        "ln2_b": jnp.zeros((emb_dim,), jnp.float32),
    }


def reference(x, p):
    def ln(v, g, b):
        mu = jnp.mean(v, -1, keepdims=True)
        var = jnp.mean((v - mu) ** 2, -1, keepdims=True)
        return (v - mu) * jax.lax.rsqrt(var + LN_EPS) * g + b

    h = ln(x, p["ln1_g"], p["ln1_b"])
    h = h @ p["w1"] + p["b1"]
    h = 0.5 * h * (1.0 + jax.lax.erf(h / math.sqrt(2.0)))
    h = h @ p["w2"] + p["b2"]
    y = ln(x + h, p["ln2_g"], p["ln2_b"])
    return y @ p["wo"] + p["bo"]


if __name__ == "__main__":
    B, S, E, H, O = 2, 8, 32, 64, 16
    key = jax.random.PRNGKey(0)
    kx, kp = jax.random.split(key)

    x = jax.random.normal(kx, (B, S, E), jnp.float32)
    params = init_params(kp, E, H, O)

    out = transformer_mlp(x, params)
    out = jax.block_until_ready(out)

    ref = reference(x, params)
    assert out.shape == (B, S, O)
    # bf16 MXU operands with f32 accumulation -> relaxed tolerance vs f32 ref.
    assert jnp.allclose(out, ref, atol=3e-2, rtol=3e-2), "mismatch vs reference"

    print("KERNEL_OK")
</pallas_src>

<mosaic_0001>
module attributes {stable_mosaic.version = 11 : i64} {
  func.func @transformer_mlp_kernel(%arg0: i32, %arg1: i32, %arg2: memref<128x32xf32, #tpu.memory_space<vmem>>, %arg3: memref<1x32xf32, #tpu.memory_space<vmem>>, %arg4: memref<1x32xf32, #tpu.memory_space<vmem>>, %arg5: memref<32x128xbf16, #tpu.memory_space<vmem>>, %arg6: memref<1x128xf32, #tpu.memory_space<vmem>>, %arg7: memref<128x32xbf16, #tpu.memory_space<vmem>>, %arg8: memref<1x32xf32, #tpu.memory_space<vmem>>, %arg9: memref<1x32xf32, #tpu.memory_space<vmem>>, %arg10: memref<1x32xf32, #tpu.memory_space<vmem>>, %arg11: memref<32x128xbf16, #tpu.memory_space<vmem>>, %arg12: memref<1x128xf32, #tpu.memory_space<vmem>>, %arg13: memref<128x128xf32, #tpu.memory_space<vmem>>, %arg14: memref<128x32xf32, #tpu.memory_space<vmem>>) attributes {dimension_semantics = [#tpu.dimension_semantics<parallel>, #tpu.dimension_semantics<arbitrary>], iteration_bounds = array<i64: 1, 1>, scalar_prefetch = 0 : i64, scratch_operands = 1 : i64, tpu.core_type = #tpu.core_type<tc>, window_params = [{transform_indices = @transform_0, window_bounds = array<i64: 128, 32>}, {pipeline_mode = #tpu.pipeline_mode<synchronous>, transform_indices = @transform_1, window_bounds = array<i64: 1, 32>}, {pipeline_mode = #tpu.pipeline_mode<synchronous>, transform_indices = @transform_2, window_bounds = array<i64: 1, 32>}, {transform_indices = @transform_3, window_bounds = array<i64: 32, 128>}, {transform_indices = @transform_4, window_bounds = array<i64: 1, 128>}, {transform_indices = @transform_5, window_bounds = array<i64: 128, 32>}, {pipeline_mode = #tpu.pipeline_mode<synchronous>, transform_indices = @transform_6, window_bounds = array<i64: 1, 32>}, {pipeline_mode = #tpu.pipeline_mode<synchronous>, transform_indices = @transform_7, window_bounds = array<i64: 1, 32>}, {pipeline_mode = #tpu.pipeline_mode<synchronous>, transform_indices = @transform_8, window_bounds = array<i64: 1, 32>}, {pipeline_mode = #tpu.pipeline_mode<synchronous>, transform_indices = @transform_9, window_bounds = array<i64: 32, 128>}, {pipeline_mode = #tpu.pipeline_mode<synchronous>, transform_indices = @transform_10, window_bounds = array<i64: 1, 128>}, {transform_indices = @transform_11, window_bounds = array<i64: 128, 128>}]} {
    %c0 = arith.constant 0 : index
    %c0_0 = arith.constant 0 : index
    %0 = vector.load %arg2[%c0, %c0_0] : memref<128x32xf32, #tpu.memory_space<vmem>>, vector<128x32xf32>
    %c0_i32 = arith.constant 0 : i32
    %1 = arith.cmpi eq, %arg1, %c0_i32 : i32
    %2 = arith.extui %1 : i1 to i32
    %c0_i32_1 = arith.constant 0 : i32
    %3 = arith.cmpi ne, %2, %c0_i32_1 : i32
    scf.if %3 {
      %cst_27 = arith.constant 0.000000e+00 : f32
      %49 = vector.broadcast %cst_27 : f32 to vector<128x32xf32>
      %c0_28 = arith.constant 0 : index
      %c0_29 = arith.constant 0 : index
      %50 = vector.load %arg14[%c0_28, %c0_29] : memref<128x32xf32, #tpu.memory_space<vmem>>, vector<128x32xf32>
      tpu.vector_store %arg14[%c0_28, %c0_29], %49 {strides = array<i32>} : memref<128x32xf32, #tpu.memory_space<vmem>>, vector<128x32xf32>,
    } else {
    }
    %c0_2 = arith.constant 0 : index
    %c0_3 = arith.constant 0 : index
    %4 = vector.load %arg3[%c0_2, %c0_3] : memref<1x32xf32, #tpu.memory_space<vmem>>, vector<1x32xf32>
    %c0_4 = arith.constant 0 : index
    %c0_5 = arith.constant 0 : index
    %5 = vector.load %arg4[%c0_4, %c0_5] : memref<1x32xf32, #tpu.memory_space<vmem>>, vector<1x32xf32>
    %cst = arith.constant dense<0.000000e+00> : vector<128xf32>
    %6 = vector.multi_reduction <add>, %0, %cst [1] : vector<128x32xf32> to vector<128xf32>
    %7 = vector.shape_cast %6 : vector<128xf32> to vector<128x1xf32>
    %cst_6 = arith.constant 3.200000e+01 : f32
    %8 = vector.broadcast %cst_6 : f32 to vector<128x1xf32>
    %9 = arith.divf %7, %8 : vector<128x1xf32>
    %10 = vector.broadcast %9 : vector<128x1xf32> to vector<128x32xf32>
    %11 = arith.subf %0, %10 : vector<128x32xf32>
    %12 = arith.mulf %11, %11 : vector<128x32xf32>
    %cst_7 = arith.constant dense<0.000000e+00> : vector<128xf32>
    %13 = vector.multi_reduction <add>, %12, %cst_7 [1] : vector<128x32xf32> to vector<128xf32>
    %14 = vector.shape_cast %13 : vector<128xf32> to vector<128x1xf32>
    %cst_8 = arith.constant 3.200000e+01 : f32
    %15 = vector.broadcast %cst_8 : f32 to vector<128x1xf32>
    %16 = arith.divf %14, %15 : vector<128x1xf32>
    %cst_9 = arith.constant 9.99999974E-6 : f32
    %17 = vector.broadcast %cst_9 : f32 to vector<128x1xf32>
    %18 = arith.addf %16, %17 : vector<128x1xf32>
    %19 = math.rsqrt %18 : vector<128x1xf32>
    %20 = vector.broadcast %19 : vector<128x1xf32> to vector<128x32xf32>
    %21 = arith.mulf %11, %20 : vector<128x32xf32>
    %22 = vector.broadcast %4 : vector<1x32xf32> to vector<128x32xf32>
    %23 = arith.mulf %21, %22 : vector<128x32xf32>
    %24 = vector.broadcast %5 : vector<1x32xf32> to vector<128x32xf32>
    %25 = arith.addf %23, %24 : vector<128x32xf32>
    %26 = arith.truncf %25 : vector<128x32xf32> to vector<128x32xbf16>
    %c0_10 = arith.constant 0 : index
    %c0_11 = arith.constant 0 : index
    %27 = vector.load %arg5[%c0_10, %c0_11] : memref<32x128xbf16, #tpu.memory_space<vmem>>, vector<32x128xbf16>
    %cst_12 = arith.constant dense<0.000000e+00> : vector<128x128xf32>
    %28 = tpu.matmul %26, %27, %cst_12 {dimension_numbers = #tpu.dot_dimension_numbers<[1], [0], [0], [1], [0, 0, 1, 1], [], []>} : vector<128x32xbf16>, vector<32x128xbf16>, vector<128x128xf32> -> vector<128x128xf32>
    %c0_13 = arith.constant 0 : index
    %c0_14 = arith.constant 0 : index
    %29 = vector.load %arg6[%c0_13, %c0_14] : memref<1x128xf32, #tpu.memory_space<vmem>>, vector<1x128xf32>
    %30 = vector.broadcast %29 : vector<1x128xf32> to vector<128x128xf32>
    %31 = arith.addf %28, %30 : vector<128x128xf32>
    %cst_15 = arith.constant 5.000000e-01 : f32
    %32 = vector.broadcast %cst_15 : f32 to vector<128x128xf32>
    %33 = arith.mulf %32, %31 : vector<128x128xf32>
    %cst_16 = arith.constant 0.707106769 : f32
    %34 = vector.broadcast %cst_16 : f32 to vector<128x128xf32>
    %35 = arith.mulf %31, %34 : vector<128x128xf32>
    %36 = math.erf %35 : vector<128x128xf32>
    %cst_17 = arith.constant 1.000000e+00 : f32
    %37 = vector.broadcast %cst_17 : f32 to vector<128x128xf32>
    %38 = arith.addf %37, %36 : vector<128x128xf32>
    %39 = arith.mulf %33, %38 : vector<128x128xf32>
    %c0_18 = arith.constant 0 : index
    %c0_19 = arith.constant 0 : index
    %40 = vector.load %arg14[%c0_18, %c0_19] : memref<128x32xf32, #tpu.memory_space<vmem>>, vector<128x32xf32>
    %41 = arith.truncf %39 : vector<128x128xf32> to vector<128x128xbf16>
    %c0_20 = arith.constant 0 : index
    %c0_21 = arith.constant 0 : index
    %42 = vector.load %arg7[%c0_20, %c0_21] : memref<128x32xbf16, #tpu.memory_space<vmem>>, vector<128x32xbf16>
    %cst_22 = arith.constant dense<0.000000e+00> : vector<128x32xf32>
    %43 = tpu.matmul %41, %42, %cst_22 {dimension_numbers = #tpu.dot_dimension_numbers<[1], [0], [0], [1], [0, 0, 1, 1], [], []>} : vector<128x128xbf16>, vector<128x32xbf16>, vector<128x32xf32> -> vector<128x32xf32>
    %44 = arith.addf %40, %43 : vector<128x32xf32>
    %c0_23 = arith.constant 0 : index
    %c0_24 = arith.constant 0 : index
    %45 = vector.load %arg14[%c0_23, %c0_24] : memref<128x32xf32, #tpu.memory_space<vmem>>, vector<128x32xf32>
    tpu.vector_store %arg14[%c0_23, %c0_24], %44 {strides = array<i32>} : memref<128x32xf32, #tpu.memory_space<vmem>>, vector<128x32xf32>,
    %c0_i32_25 = arith.constant 0 : i32
    %46 = arith.cmpi eq, %arg1, %c0_i32_25 : i32
    %47 = arith.extui %46 : i1 to i32
    %c0_i32_26 = arith.constant 0 : i32
    %48 = arith.cmpi ne, %47, %c0_i32_26 : i32
    scf.if %48 {
      %c0_27 = arith.constant 0 : index
      %c0_28 = arith.constant 0 : index
      %49 = vector.load %arg14[%c0_27, %c0_28] : memref<128x32xf32, #tpu.memory_space<vmem>>, vector<128x32xf32>
      %50 = arith.addf %0, %49 : vector<128x32xf32>
      %c0_29 = arith.constant 0 : index
      %c0_30 = arith.constant 0 : index
      %51 = vector.load %arg8[%c0_29, %c0_30] : memref<1x32xf32, #tpu.memory_space<vmem>>, vector<1x32xf32>
      %52 = vector.broadcast %51 : vector<1x32xf32> to vector<128x32xf32>
      %53 = arith.addf %50, %52 : vector<128x32xf32>
      %c0_31 = arith.constant 0 : index
      %c0_32 = arith.constant 0 : index
      %54 = vector.load %arg9[%c0_31, %c0_32] : memref<1x32xf32, #tpu.memory_space<vmem>>, vector<1x32xf32>
      %c0_33 = arith.constant 0 : index
      %c0_34 = arith.constant 0 : index
      %55 = vector.load %arg10[%c0_33, %c0_34] : memref<1x32xf32, #tpu.memory_space<vmem>>, vector<1x32xf32>
      %cst_35 = arith.constant dense<0.000000e+00> : vector<128xf32>
      %56 = vector.multi_reduction <add>, %53, %cst_35 [1] : vector<128x32xf32> to vector<128xf32>
      %57 = vector.shape_cast %56 : vector<128xf32> to vector<128x1xf32>
      %cst_36 = arith.constant 3.200000e+01 : f32
      %58 = vector.broadcast %cst_36 : f32 to vector<128x1xf32>
      %59 = arith.divf %57, %58 : vector<128x1xf32>
      %60 = vector.broadcast %59 : vector<128x1xf32> to vector<128x32xf32>
      %61 = arith.subf %53, %60 : vector<128x32xf32>
      %62 = arith.mulf %61, %61 : vector<128x32xf32>
      %cst_37 = arith.constant dense<0.000000e+00> : vector<128xf32>
      %63 = vector.multi_reduction <add>, %62, %cst_37 [1] : vector<128x32xf32> to vector<128xf32>
      %64 = vector.shape_cast %63 : vector<128xf32> to vector<128x1xf32>
      %cst_38 = arith.constant 3.200000e+01 : f32
      %65 = vector.broadcast %cst_38 : f32 to vector<128x1xf32>
      %66 = arith.divf %64, %65 : vector<128x1xf32>
      %cst_39 = arith.constant 9.99999974E-6 : f32
      %67 = vector.broadcast %cst_39 : f32 to vector<128x1xf32>
      %68 = arith.addf %66, %67 : vector<128x1xf32>
      %69 = math.rsqrt %68 : vector<128x1xf32>
      %70 = vector.broadcast %69 : vector<128x1xf32> to vector<128x32xf32>
      %71 = arith.mulf %61, %70 : vector<128x32xf32>
      %72 = vector.broadcast %54 : vector<1x32xf32> to vector<128x32xf32>
      %73 = arith.mulf %71, %72 : vector<128x32xf32>
      %74 = vector.broadcast %55 : vector<1x32xf32> to vector<128x32xf32>
      %75 = arith.addf %73, %74 : vector<128x32xf32>
      %76 = arith.truncf %75 : vector<128x32xf32> to vector<128x32xbf16>
      %c0_40 = arith.constant 0 : index
      %c0_41 = arith.constant 0 : index
      %77 = vector.load %arg11[%c0_40, %c0_41] : memref<32x128xbf16, #tpu.memory_space<vmem>>, vector<32x128xbf16>
      %cst_42 = arith.constant dense<0.000000e+00> : vector<128x128xf32>
      %78 = tpu.matmul %76, %77, %cst_42 {dimension_numbers = #tpu.dot_dimension_numbers<[1], [0], [0], [1], [0, 0, 1, 1], [], []>} : vector<128x32xbf16>, vector<32x128xbf16>, vector<128x128xf32> -> vector<128x128xf32>
      %c0_43 = arith.constant 0 : index
      %c0_44 = arith.constant 0 : index
      %79 = vector.load %arg12[%c0_43, %c0_44] : memref<1x128xf32, #tpu.memory_space<vmem>>, vector<1x128xf32>
      %80 = vector.broadcast %79 : vector<1x128xf32> to vector<128x128xf32>
      %81 = arith.addf %78, %80 : vector<128x128xf32>
      %c0_45 = arith.constant 0 : index
      %c0_46 = arith.constant 0 : index
      %82 = vector.load %arg13[%c0_45, %c0_46] : memref<128x128xf32, #tpu.memory_space<vmem>>, vector<128x128xf32>
      tpu.vector_store %arg13[%c0_45, %c0_46], %81 {strides = array<i32>} : memref<128x128xf32, #tpu.memory_space<vmem>>, vector<128x128xf32>,
    } else {
    }
    return
  }
  func.func @transform_0(%arg0: i32, %arg1: i32) -> (i32, i32) {
    %c0_i32 = arith.constant 0 : i32
    %c0_i32_0 = arith.constant 0 : i32
    return %arg0, %c0_i32 : i32, i32
  }
  func.func @transform_1(%arg0: i32, %arg1: i32) -> (i32, i32) {
    %c0_i32 = arith.constant 0 : i32
    %c0_i32_0 = arith.constant 0 : i32
    %c0_i32_1 = arith.constant 0 : i32
    return %c0_i32, %c0_i32_0 : i32, i32
  }
  func.func @transform_2(%arg0: i32, %arg1: i32) -> (i32, i32) {
    %c0_i32 = arith.constant 0 : i32
    %c0_i32_0 = arith.constant 0 : i32
    %c0_i32_1 = arith.constant 0 : i32
    return %c0_i32, %c0_i32_0 : i32, i32
  }
  func.func @transform_3(%arg0: i32, %arg1: i32) -> (i32, i32) {
    %c0_i32 = arith.constant 0 : i32
    %c0_i32_0 = arith.constant 0 : i32
    return %c0_i32, %arg1 : i32, i32
  }
  func.func @transform_4(%arg0: i32, %arg1: i32) -> (i32, i32) {
    %c0_i32 = arith.constant 0 : i32
    %c0_i32_0 = arith.constant 0 : i32
    return %c0_i32, %arg1 : i32, i32
  }
  func.func @transform_5(%arg0: i32, %arg1: i32) -> (i32, i32) {
    %c0_i32 = arith.constant 0 : i32
    %c0_i32_0 = arith.constant 0 : i32
    return %arg1, %c0_i32 : i32, i32
  }
  func.func @transform_6(%arg0: i32, %arg1: i32) -> (i32, i32) {
    %c0_i32 = arith.constant 0 : i32
    %c0_i32_0 = arith.constant 0 : i32
    %c0_i32_1 = arith.constant 0 : i32
    return %c0_i32, %c0_i32_0 : i32, i32
  }
  func.func @transform_7(%arg0: i32, %arg1: i32) -> (i32, i32) {
    %c0_i32 = arith.constant 0 : i32
    %c0_i32_0 = arith.constant 0 : i32
    %c0_i32_1 = arith.constant 0 : i32
    return %c0_i32, %c0_i32_0 : i32, i32
  }
  func.func @transform_8(%arg0: i32, %arg1: i32) -> (i32, i32) {
    %c0_i32 = arith.constant 0 : i32
    %c0_i32_0 = arith.constant 0 : i32
    %c0_i32_1 = arith.constant 0 : i32
    return %c0_i32, %c0_i32_0 : i32, i32
  }
  func.func @transform_9(%arg0: i32, %arg1: i32) -> (i32, i32) {
    %c0_i32 = arith.constant 0 : i32
    %c0_i32_0 = arith.constant 0 : i32
    %c0_i32_1 = arith.constant 0 : i32
    return %c0_i32, %c0_i32_0 : i32, i32
  }
  func.func @transform_10(%arg0: i32, %arg1: i32) -> (i32, i32) {
    %c0_i32 = arith.constant 0 : i32
    %c0_i32_0 = arith.constant 0 : i32
    %c0_i32_1 = arith.constant 0 : i32
    return %c0_i32, %c0_i32_0 : i32, i32
  }
  func.func @transform_11(%arg0: i32, %arg1: i32) -> (i32, i32) {
    %c0_i32 = arith.constant 0 : i32
    %c0_i32_0 = arith.constant 0 : i32
    return %arg0, %c0_i32 : i32, i32
  }
}

</mosaic_0001>

<llo_original>
// kernel: tpu_custom_call.1
$region0: #{tpu_custom_call.1}
  #allocation0 [shape = 'u32[]', space=smem, size = 0x4, offset = 0x4, fixed_abs, tag = 'smem constant byte address 0x4 - core index']
  #allocation1 [shape = 'u32[72,128]{1,0:T(1,128)}', space=vmem, size = 0x9000, scoped, tag = 'internal scratch']
  #allocation2 [shape = 'f32[128,32]{1,0:T(8,128)}', space=vmem, size = 0x10000, scoped, tag = 'scratch operand']
  %s0 = inlined_call_operand.vmem [shape: f32[128,32], index: 0, kind: input, shape index: {}]
  %s1 = inlined_call_operand.vmem [shape: f32[1,32], index: 1, kind: input, shape index: {}]
  %s2 = inlined_call_operand.vmem [shape: f32[1,32], index: 2, kind: input, shape index: {}]
  %s3 = inlined_call_operand.vmem [shape: bf16[32,128], index: 3, kind: input, shape index: {}]
  %s4 = inlined_call_operand.vmem [shape: f32[1,128], index: 4, kind: input, shape index: {}]
  %s5 = inlined_call_operand.vmem [shape: bf16[128,32], index: 5, kind: input, shape index: {}]
  %s6 = inlined_call_operand.vmem [shape: f32[1,32], index: 6, kind: input, shape index: {}]
  %s7 = inlined_call_operand.vmem [shape: f32[1,32], index: 7, kind: input, shape index: {}]
  %s8 = inlined_call_operand.vmem [shape: f32[1,32], index: 8, kind: input, shape index: {}]
  %s9 = inlined_call_operand.vmem [shape: bf16[32,128], index: 9, kind: input, shape index: {}]
  %s10 = inlined_call_operand.vmem [shape: f32[1,128], index: 10, kind: input, shape index: {}]
  %s11 = inlined_call_operand.hbm [shape: f32[128,128], index: 11, kind: output, shape index: {}]
  %s12 = sld [smem:[#allocation0]]
  $region62: #{tpu_custom_call.1} parent=0
    _
  %s14 = ssub.s32 1, %s12
  %s15 = scalar_select 0, %s14, %s12
  $region1: #{tpu_custom_call.1} parent=0
    #allocation3 [shape = 'u8[65536]{0}', space=vmem, size = 0x10000, scoped, tag = 'output window, operand 0, single buffered']
    #allocation4 [shape = 's32[1]{0}', space=sflag, size = 0x4, scoped, tag = 'scoped memory for tpu_custom_call.1']
    %16 = vsyncpa [#allocation4], 0
    // Predicated region
    $region2: #{tpu_custom_call.1} parent=1 // pred_check
      _
    $region3: #{tpu_custom_call.1} parent=1 // pred_check_branch
      %18 = sbr.rel (0) target = $region5
    $region4: #{tpu_custom_call.1} parent=1 // pred_region
      _
    $region5: #{tpu_custom_call.1} parent=1 // pred_fallthru
      _
    // Predicated region
    $region6: #{tpu_custom_call.1} parent=1 // pred_check
      _
    $region7: #{tpu_custom_call.1} parent=1 // pred_check_branch
      %20 = sbr.rel (0) target = $region9
    $region8: #{tpu_custom_call.1} parent=1 // pred_region
      _
    $region9: #{tpu_custom_call.1} parent=1 // pred_fallthru
      _
    // Predicated region
    $region10: #{tpu_custom_call.1} parent=1 // pred_check
      _
    $region11: #{tpu_custom_call.1} parent=1 // pred_check_branch
      %22 = sbr.rel (0) target = $region13
    $region12: #{tpu_custom_call.1} parent=1 // pred_region
      _
    $region13: #{tpu_custom_call.1} parent=1 // pred_fallthru
      _
    // Predicated region
    $region14: #{tpu_custom_call.1} parent=1 // pred_check
      _
    $region15: #{tpu_custom_call.1} parent=1 // pred_check_branch
      %24 = sbr.rel (0) target = $region17
    $region16: #{tpu_custom_call.1} parent=1 // pred_region
      _
    $region17: #{tpu_custom_call.1} parent=1 // pred_fallthru
      _
    // Predicated region
    $region18: #{tpu_custom_call.1} parent=1 // pred_check
      _
    $region19: #{tpu_custom_call.1} parent=1 // pred_check_branch
      %26 = sbr.rel (0) target = $region21
    $region20: #{tpu_custom_call.1} parent=1 // pred_region
      _
    $region21: #{tpu_custom_call.1} parent=1 // pred_fallthru
      _
    // Predicated region
    $region22: #{tpu_custom_call.1} parent=1 // pred_check
      _
    $region23: #{tpu_custom_call.1} parent=1 // pred_check_branch
      %28 = sbr.rel (0) target = $region25
    $region24: #{tpu_custom_call.1} parent=1 // pred_region
      _
    $region25: #{tpu_custom_call.1} parent=1 // pred_fallthru
      _
    // Predicated region
    $region26: #{tpu_custom_call.1} parent=1 // pred_check
      _
    $region27: #{tpu_custom_call.1} parent=1 // pred_check_branch
      %30 = sbr.rel (0) target = $region29
    $region28: #{tpu_custom_call.1} parent=1 // pred_region
      _
    $region29: #{tpu_custom_call.1} parent=1 // pred_fallthru
      _
    // Predicated region
    $region30: #{tpu_custom_call.1} parent=1 // pred_check
      _
    $region31: #{tpu_custom_call.1} parent=1 // pred_check_branch
      %32 = sbr.rel (0) target = $region33
    $region32: #{tpu_custom_call.1} parent=1 // pred_region
      _
    $region33: #{tpu_custom_call.1} parent=1 // pred_fallthru
      _
    // Predicated region
    $region34: #{tpu_custom_call.1} parent=1 // pred_check
      _
    $region35: #{tpu_custom_call.1} parent=1 // pred_check_branch
      %34 = sbr.rel (0) target = $region37
    $region36: #{tpu_custom_call.1} parent=1 // pred_region
      _
    $region37: #{tpu_custom_call.1} parent=1 // pred_fallthru
      _
    // Predicated region
    $region38: #{tpu_custom_call.1} parent=1 // pred_check
      _
    $region39: #{tpu_custom_call.1} parent=1 // pred_check_branch
      %36 = sbr.rel (0) target = $region41
    $region40: #{tpu_custom_call.1} parent=1 // pred_region
      _
    $region41: #{tpu_custom_call.1} parent=1 // pred_fallthru
      _
    // Predicated region
    $region42: #{tpu_custom_call.1} parent=1 // pred_check
      _
    $region43: #{tpu_custom_call.1} parent=1 // pred_check_branch
      %38 = sbr.rel (0) target = $region45
    $region44: #{tpu_custom_call.1} parent=1 // pred_region
      _
    $region45: #{tpu_custom_call.1} parent=1 // pred_fallthru
      _
    %v40 = vld [vmem:[%s0] sm:$0xff]
    %v41 = vld [vmem:[%s0 + $0x8] sm:$0xff]
    %v42 = vld [vmem:[%s0 + $0x10] sm:$0xff]
    %v43 = vld [vmem:[%s0 + $0x18] sm:$0xff]
    %v44 = vld [vmem:[%s0 + $0x20] sm:$0xff]
    %v45 = vld [vmem:[%s0 + $0x28] sm:$0xff]
    %v46 = vld [vmem:[%s0 + $0x30] sm:$0xff]
    %v47 = vld [vmem:[%s0 + $0x38] sm:$0xff]
    %v48 = vld [vmem:[%s0 + $0x40] sm:$0xff]
    %v49 = vld [vmem:[%s0 + $0x48] sm:$0xff]
    %v50 = vld [vmem:[%s0 + $0x50] sm:$0xff]
    %v51 = vld [vmem:[%s0 + $0x58] sm:$0xff]
    %v52 = vld [vmem:[%s0 + $0x60] sm:$0xff]
    %v53 = vld [vmem:[%s0 + $0x68] sm:$0xff]
    %v54 = vld [vmem:[%s0 + $0x70] sm:$0xff]
    %v55 = vld [vmem:[%s0 + $0x78] sm:$0xff]
    %p56 = scmp.eq.s32.totalorder 0, 0
    // Predicated region
    $region46: #{tpu_custom_call.1} parent=1 // pred_check
      %p57 = pneg %p56
    $region47: #{tpu_custom_call.1} parent=1 // pred_check_branch
      %59 = sbr.rel (%p57) target = $region49
    $region48: #{tpu_custom_call.1} parent=1 // pred_region
      %vm60 = vcmask 261120
      %61 = vst.msk [vmem:[#allocation2] sm:$0xff] %vm60, 0.0
      %62 = vst.msk [vmem:[#allocation2 + $0x8] sm:$0xff] %vm60, 0.0
      %63 = vst.msk [vmem:[#allocation2 + $0x10] sm:$0xff] %vm60, 0.0
      %64 = vst.msk [vmem:[#allocation2 + $0x18] sm:$0xff] %vm60, 0.0
      %65 = vst.msk [vmem:[#allocation2 + $0x20] sm:$0xff] %vm60, 0.0
      %66 = vst.msk [vmem:[#allocation2 + $0x28] sm:$0xff] %vm60, 0.0
      %67 = vst.msk [vmem:[#allocation2 + $0x30] sm:$0xff] %vm60, 0.0
      %68 = vst.msk [vmem:[#allocation2 + $0x38] sm:$0xff] %vm60, 0.0
      %69 = vst.msk [vmem:[#allocation2 + $0x40] sm:$0xff] %vm60, 0.0
      %70 = vst.msk [vmem:[#allocation2 + $0x48] sm:$0xff] %vm60, 0.0
      %71 = vst.msk [vmem:[#allocation2 + $0x50] sm:$0xff] %vm60, 0.0
      %72 = vst.msk [vmem:[#allocation2 + $0x58] sm:$0xff] %vm60, 0.0
      %73 = vst.msk [vmem:[#allocation2 + $0x60] sm:$0xff] %vm60, 0.0
      %74 = vst.msk [vmem:[#allocation2 + $0x68] sm:$0xff] %vm60, 0.0
      %75 = vst.msk [vmem:[#allocation2 + $0x70] sm:$0xff] %vm60, 0.0
      %76 = vst.msk [vmem:[#allocation2 + $0x78] sm:$0xff] %vm60, 0.0
    $region49: #{tpu_custom_call.1} parent=1 // pred_fallthru
      _
    %v77 = vld [vmem:[%s1] sm:$0x1]
    %v78 = vld [vmem:[%s2] sm:$0x1]
    %vm79 = vcmask 261120
    %v80 = vsel %vm79, %v40, 0.0
    %81 = vadd.xlane.f32.xlu0 %v80
    %v82 = vpop.xlane.xlu0 %81
    %v83 = vsel %vm79, %v41, 0.0
    %84 = vadd.xlane.f32.xlu0 %v83
    %v85 = vpop.xlane.xlu0 %84
    %v86 = vsel %vm79, %v42, 0.0
    %87 = vadd.xlane.f32.xlu0 %v86
    %v88 = vpop.xlane.xlu0 %87
    %v89 = vsel %vm79, %v43, 0.0
    %90 = vadd.xlane.f32.xlu0 %v89
    %v91 = vpop.xlane.xlu0 %90
    %v92 = vsel %vm79, %v44, 0.0
    %93 = vadd.xlane.f32.xlu0 %v92
    %v94 = vpop.xlane.xlu0 %93
    %v95 = vsel %vm79, %v45, 0.0
    %96 = vadd.xlane.f32.xlu0 %v95
    %v97 = vpop.xlane.xlu0 %96
    %v98 = vsel %vm79, %v46, 0.0
    %99 = vadd.xlane.f32.xlu0 %v98
    %v100 = vpop.xlane.xlu0 %99
    %v101 = vsel %vm79, %v47, 0.0
    %102 = vadd.xlane.f32.xlu0 %v101
    %v103 = vpop.xlane.xlu0 %102
    %v104 = vsel %vm79, %v48, 0.0
    %105 = vadd.xlane.f32.xlu0 %v104
    %v106 = vpop.xlane.xlu0 %105
    %v107 = vsel %vm79, %v49, 0.0
    %108 = vadd.xlane.f32.xlu0 %v107
    %v109 = vpop.xlane.xlu0 %108
    %v110 = vsel %vm79, %v50, 0.0
    %111 = vadd.xlane.f32.xlu0 %v110
    %v112 = vpop.xlane.xlu0 %111
    %v113 = vsel %vm79, %v51, 0.0
    %114 = vadd.xlane.f32.xlu0 %v113
    %v115 = vpop.xlane.xlu0 %114
    %v116 = vsel %vm79, %v52, 0.0
    %117 = vadd.xlane.f32.xlu0 %v116
    %v118 = vpop.xlane.xlu0 %117
    %v119 = vsel %vm79, %v53, 0.0
    %120 = vadd.xlane.f32.xlu0 %v119
    %v121 = vpop.xlane.xlu0 %120
    %v122 = vsel %vm79, %v54, 0.0
    %123 = vadd.xlane.f32.xlu0 %v122
    %v124 = vpop.xlane.xlu0 %123
    %v125 = vsel %vm79, %v55, 0.0
    %126 = vadd.xlane.f32.xlu0 %v125
    %v127 = vpop.xlane.xlu0 %126
    %v128 = vrcp.pop 32.0
    %v129 = vmul.f32 32.0, %v128
    %v130 = vsub.f32 1.0, %v129
    %v131 = vmul.f32 %v128, %v130
    %v132 = vadd.f32 %v128, %v131
    %vm133 = vweird.f32 %v128
    %v134 = vsel %vm133, %v128, %v132
    %v135 = vmul.f32 %v82, %v134
    %v136 = vmul.f32 %v85, %v134
    %v137 = vmul.f32 %v88, %v134
    %v138 = vmul.f32 %v91, %v134
    %v139 = vmul.f32 %v94, %v134
    %v140 = vmul.f32 %v97, %v134
    %v141 = vmul.f32 %v100, %v134
    %v142 = vmul.f32 %v103, %v134
    %v143 = vmul.f32 %v106, %v134
    %v144 = vmul.f32 %v109, %v134
    %v145 = vmul.f32 %v112, %v134
    %v146 = vmul.f32 %v115, %v134
    %v147 = vmul.f32 %v118, %v134
    %v148 = vmul.f32 %v121, %v134
    %v149 = vmul.f32 %v124, %v134
    %v150 = vmul.f32 %v127, %v134
    %v151 = vsub.f32 %v40, %v135
    %v152 = vsub.f32 %v41, %v136
    %v153 = vsub.f32 %v42, %v137
    %v154 = vsub.f32 %v43, %v138
    %v155 = vsub.f32 %v44, %v139
    %v156 = vsub.f32 %v45, %v140
    %v157 = vsub.f32 %v46, %v141
    %v158 = vsub.f32 %v47, %v142
    %v159 = vsub.f32 %v48, %v143
    %v160 = vsub.f32 %v49, %v144
    %v161 = vsub.f32 %v50, %v145
    %v162 = vsub.f32 %v51, %v146
    %v163 = vsub.f32 %v52, %v147
    %v164 = vsub.f32 %v53, %v148
    %v165 = vsub.f32 %v54, %v149
    %v166 = vsub.f32 %v55, %v150
    %v167 = vmul.f32 %v151, %v151
    %v168 = vmul.f32 %v152, %v152
    %v169 = vmul.f32 %v153, %v153
    %v170 = vmul.f32 %v154, %v154
    %v171 = vmul.f32 %v155, %v155
    %v172 = vmul.f32 %v156, %v156
    %v173 = vmul.f32 %v157, %v157
    %v174 = vmul.f32 %v158, %v158
    %v175 = vmul.f32 %v159, %v159
    %v176 = vmul.f32 %v160, %v160
    %v177 = vmul.f32 %v161, %v161
    %v178 = vmul.f32 %v162, %v162
    %v179 = vmul.f32 %v163, %v163
    %v180 = vmul.f32 %v164, %v164
    %v181 = vmul.f32 %v165, %v165
    %v182 = vmul.f32 %v166, %v166
    %v183 = vsel %vm79, %v167, 0.0
    %184 = vadd.xlane.f32.xlu0 %v183
    %v185 = vpop.xlane.xlu0 %184
    %v186 = vsel %vm79, %v168, 0.0
    %187 = vadd.xlane.f32.xlu0 %v186
    %v188 = vpop.xlane.xlu0 %187
    %v189 = vsel %vm79, %v169, 0.0
    %190 = vadd.xlane.f32.xlu0 %v189
    %v191 = vpop.xlane.xlu0 %190
    %v192 = vsel %vm79, %v170, 0.0
    %193 = vadd.xlane.f32.xlu0 %v192
    %v194 = vpop.xlane.xlu0 %193
    %v195 = vsel %vm79, %v171, 0.0
    %196 = vadd.xlane.f32.xlu0 %v195
    %v197 = vpop.xlane.xlu0 %196
    %v198 = vsel %vm79, %v172, 0.0
    %199 = vadd.xlane.f32.xlu0 %v198
    %v200 = vpop.xlane.xlu0 %199
    %v201 = vsel %vm79, %v173, 0.0
    %202 = vadd.xlane.f32.xlu0 %v201
    %v203 = vpop.xlane.xlu0 %202
    %v204 = vsel %vm79, %v174, 0.0
    %205 = vadd.xlane.f32.xlu0 %v204
    %v206 = vpop.xlane.xlu0 %205
    %v207 = vsel %vm79, %v175, 0.0
    %208 = vadd.xlane.f32.xlu0 %v207
    %v209 = vpop.xlane.xlu0 %208
    %v210 = vsel %vm79, %v176, 0.0
    %211 = vadd.xlane.f32.xlu0 %v210
    %v212 = vpop.xlane.xlu0 %211
    %v213 = vsel %vm79, %v177, 0.0
    %214 = vadd.xlane.f32.xlu0 %v213
    %v215 = vpop.xlane.xlu0 %214
    %v216 = vsel %vm79, %v178, 0.0
    %217 = vadd.xlane.f32.xlu0 %v216
    %v218 = vpop.xlane.xlu0 %217
    %v219 = vsel %vm79, %v179, 0.0
    %220 = vadd.xlane.f32.xlu0 %v219
    %v221 = vpop.xlane.xlu0 %220
    %v222 = vsel %vm79, %v180, 0.0
    %223 = vadd.xlane.f32.xlu0 %v222
    %v224 = vpop.xlane.xlu0 %223
    %v225 = vsel %vm79, %v181, 0.0
    %226 = vadd.xlane.f32.xlu0 %v225
    %v227 = vpop.xlane.xlu0 %226
    %v228 = vsel %vm79, %v182, 0.0
    %229 = vadd.xlane.f32.xlu0 %v228
    %v230 = vpop.xlane.xlu0 %229
    %v231 = vmul.f32 %v185, %v134
    %v232 = vmul.f32 %v188, %v134
    %v233 = vmul.f32 %v191, %v134
    %v234 = vmul.f32 %v194, %v134
    %v235 = vmul.f32 %v197, %v134
    %v236 = vmul.f32 %v200, %v134
    %v237 = vmul.f32 %v203, %v134
    %v238 = vmul.f32 %v206, %v134
    %v239 = vmul.f32 %v209, %v134
    %v240 = vmul.f32 %v212, %v134
    %v241 = vmul.f32 %v215, %v134
    %v242 = vmul.f32 %v218, %v134
    %v243 = vmul.f32 %v221, %v134
    %v244 = vmul.f32 %v224, %v134
    %v245 = vmul.f32 %v227, %v134
    %v246 = vmul.f32 %v230, %v134
    %v247 = vadd.f32 %v231, 1e-05
    %v248 = vadd.f32 %v232, 1e-05
    %v249 = vadd.f32 %v233, 1e-05
    %v250 = vadd.f32 %v234, 1e-05
    %v251 = vadd.f32 %v235, 1e-05
    %v252 = vadd.f32 %v236, 1e-05
    %v253 = vadd.f32 %v237, 1e-05
    %v254 = vadd.f32 %v238, 1e-05
    %v255 = vadd.f32 %v239, 1e-05
    %v256 = vadd.f32 %v240, 1e-05
    %v257 = vadd.f32 %v241, 1e-05
    %v258 = vadd.f32 %v242, 1e-05
    %v259 = vadd.f32 %v243, 1e-05
    %v260 = vadd.f32 %v244, 1e-05
    %v261 = vadd.f32 %v245, 1e-05
    %v262 = vadd.f32 %v246, 1e-05
    %v263 = vrsqrt.pop %v247
    %v264 = vmul.f32 %v263, %v247
    %v265 = vmul.f32 %v264, %v263
    %v266 = vmul.f32 0.5, %v265
    %v267 = vsub.f32 1.5, %v266
    %v268 = vmul.f32 %v263, %v267
    %vm269 = vweird.f32 %v247
    %vm270 = vweird.f32 %v263
    %vm271 = vmor %vm269, %vm270
    %v272 = vsel %vm271, %v263, %v268
    %v273 = vrsqrt.pop %v248
    %v274 = vmul.f32 %v273, %v248
    %v275 = vmul.f32 %v274, %v273
    %v276 = vmul.f32 0.5, %v275
    %v277 = vsub.f32 1.5, %v276
    %v278 = vmul.f32 %v273, %v277
    %vm279 = vweird.f32 %v248
    %vm280 = vweird.f32 %v273
    %vm281 = vmor %vm279, %vm280
    %v282 = vsel %vm281, %v273, %v278
    %v283 = vrsqrt.pop %v249
    %v284 = vmul.f32 %v283, %v249
    %v285 = vmul.f32 %v284, %v283
    %v286 = vmul.f32 0.5, %v285
    %v287 = vsub.f32 1.5, %v286
    %v288 = vmul.f32 %v283, %v287
    %vm289 = vweird.f32 %v249
    %vm290 = vweird.f32 %v283
    %vm291 = vmor %vm289, %vm290
    %v292 = vsel %vm291, %v283, %v288
    %v293 = vrsqrt.pop %v250
    %v294 = vmul.f32 %v293, %v250
    %v295 = vmul.f32 %v294, %v293
    %v296 = vmul.f32 0.5, %v295
    %v297 = vsub.f32 1.5, %v296
    %v298 = vmul.f32 %v293, %v297
    %vm299 = vweird.f32 %v250
    %vm300 = vweird.f32 %v293
    %vm301 = vmor %vm299, %vm300
    %v302 = vsel %vm301, %v293, %v298
    %v303 = vrsqrt.pop %v251
    %v304 = vmul.f32 %v303, %v251
    %v305 = vmul.f32 %v304, %v303
    %v306 = vmul.f32 0.5, %v305
    %v307 = vsub.f32 1.5, %v306
    %v308 = vmul.f32 %v303, %v307
    %vm309 = vweird.f32 %v251
    %vm310 = vweird.f32 %v303
    %vm311 = vmor %vm309, %vm310
    %v312 = vsel %vm311, %v303, %v308
    %v313 = vrsqrt.pop %v252
    %v314 = vmul.f32 %v313, %v252
    %v315 = vmul.f32 %v314, %v313
    %v316 = vmul.f32 0.5, %v315
    %v317 = vsub.f32 1.5, %v316
    %v318 = vmul.f32 %v313, %v317
    %vm319 = vweird.f32 %v252
    %vm320 = vweird.f32 %v313
    %vm321 = vmor %vm319, %vm320
    %v322 = vsel %vm321, %v313, %v318
    %v323 = vrsqrt.pop %v253
    %v324 = vmul.f32 %v323, %v253
    %v325 = vmul.f32 %v324, %v323
    %v326 = vmul.f32 0.5, %v325
    %v327 = vsub.f32 1.5, %v326
    %v328 = vmul.f32 %v323, %v327
    %vm329 = vweird.f32 %v253
    %vm330 = vweird.f32 %v323
    %vm331 = vmor %vm329, %vm330
    %v332 = vsel %vm331, %v323, %v328
    %v333 = vrsqrt.pop %v254
    %v334 = vmul.f32 %v333, %v254
    %v335 = vmul.f32 %v334, %v333
    %v336 = vmul.f32 0.5, %v335
    %v337 = vsub.f32 1.5, %v336
    %v338 = vmul.f32 %v333, %v337
    %vm339 = vweird.f32 %v254
    %vm340 = vweird.f32 %v333
    %vm341 = vmor %vm339, %vm340
    %v342 = vsel %vm341, %v333, %v338
    %v343 = vrsqrt.pop %v255
    %v344 = vmul.f32 %v343, %v255
    %v345 = vmul.f32 %v344, %v343
    %v346 = vmul.f32 0.5, %v345
    %v347 = vsub.f32 1.5, %v346
    %v348 = vmul.f32 %v343, %v347
    %vm349 = vweird.f32 %v255
    %vm350 = vweird.f32 %v343
    %vm351 = vmor %vm349, %vm350
    %v352 = vsel %vm351, %v343, %v348
    %v353 = vrsqrt.pop %v256
    %v354 = vmul.f32 %v353, %v256
    %v355 = vmul.f32 %v354, %v353
    %v356 = vmul.f32 0.5, %v355
    %v357 = vsub.f32 1.5, %v356
    %v358 = vmul.f32 %v353, %v357
    %vm359 = vweird.f32 %v256
    %vm360 = vweird.f32 %v353
    %vm361 = vmor %vm359, %vm360
    %v362 = vsel %vm361, %v353, %v358
    %v363 = vrsqrt.pop %v257
    %v364 = vmul.f32 %v363, %v257
    %v365 = vmul.f32 %v364, %v363
    %v366 = vmul.f32 0.5, %v365
    %v367 = vsub.f32 1.5, %v366
    %v368 = vmul.f32 %v363, %v367
    %vm369 = vweird.f32 %v257
    %vm370 = vweird.f32 %v363
    %vm371 = vmor %vm369, %vm370
    %v372 = vsel %vm371, %v363, %v368
    %v373 = vrsqrt.pop %v258
    %v374 = vmul.f32 %v373, %v258
    %v375 = vmul.f32 %v374, %v373
    %v376 = vmul.f32 0.5, %v375
    %v377 = vsub.f32 1.5, %v376
    %v378 = vmul.f32 %v373, %v377
    %vm379 = vweird.f32 %v258
    %vm380 = vweird.f32 %v373
    %vm381 = vmor %vm379, %vm380
    %v382 = vsel %vm381, %v373, %v378
    %v383 = vrsqrt.pop %v259
    %v384 = vmul.f32 %v383, %v259
    %v385 = vmul.f32 %v384, %v383
    %v386 = vmul.f32 0.5, %v385
    %v387 = vsub.f32 1.5, %v386
    %v388 = vmul.f32 %v383, %v387
    %vm389 = vweird.f32 %v259
    %vm390 = vweird.f32 %v383
    %vm391 = vmor %vm389, %vm390
    %v392 = vsel %vm391, %v383, %v388
    %v393 = vrsqrt.pop %v260
    %v394 = vmul.f32 %v393, %v260
    %v395 = vmul.f32 %v394, %v393
    %v396 = vmul.f32 0.5, %v395
    %v397 = vsub.f32 1.5, %v396
    %v398 = vmul.f32 %v393, %v397
    %vm399 = vweird.f32 %v260
    %vm400 = vweird.f32 %v393
    %vm401 = vmor %vm399, %vm400
    %v402 = vsel %vm401, %v393, %v398
    %v403 = vrsqrt.pop %v261
    %v404 = vmul.f32 %v403, %v261
    %v405 = vmul.f32 %v404, %v403
    %v406 = vmul.f32 0.5, %v405
    %v407 = vsub.f32 1.5, %v406
    %v408 = vmul.f32 %v403, %v407
    %vm409 = vweird.f32 %v261
    %vm410 = vweird.f32 %v403
    %vm411 = vmor %vm409, %vm410
    %v412 = vsel %vm411, %v403, %v408
    %v413 = vrsqrt.pop %v262
    %v414 = vmul.f32 %v413, %v262
    %v415 = vmul.f32 %v414, %v413
    %v416 = vmul.f32 0.5, %v415
    %v417 = vsub.f32 1.5, %v416
    %v418 = vmul.f32 %v413, %v417
    %vm419 = vweird.f32 %v262
    %vm420 = vweird.f32 %v413
    %vm421 = vmor %vm419, %vm420
    %v422 = vsel %vm421, %v413, %v418
    %v423 = vmul.f32 %v151, %v272
    %v424 = vmul.f32 %v152, %v282
    %v425 = vmul.f32 %v153, %v292
    %v426 = vmul.f32 %v154, %v302
    %v427 = vmul.f32 %v155, %v312
    %v428 = vmul.f32 %v156, %v322
    %v429 = vmul.f32 %v157, %v332
    %v430 = vmul.f32 %v158, %v342
    %v431 = vmul.f32 %v159, %v352
    %v432 = vmul.f32 %v160, %v362
    %v433 = vmul.f32 %v161, %v372
    %v434 = vmul.f32 %v162, %v382
    %v435 = vmul.f32 %v163, %v392
    %v436 = vmul.f32 %v164, %v402
    %v437 = vmul.f32 %v165, %v412
    %v438 = vmul.f32 %v166, %v422
    %v440 = vperm.slane %v77, 0
    %v442 = vmul.f32 %v423, %v440
    %v443 = vmul.f32 %v424, %v440
    %v444 = vmul.f32 %v425, %v440
    %v445 = vmul.f32 %v426, %v440
    %v446 = vmul.f32 %v427, %v440
    %v447 = vmul.f32 %v428, %v440
    %v448 = vmul.f32 %v429, %v440
    %v449 = vmul.f32 %v430, %v440
    %v450 = vmul.f32 %v431, %v440
    %v451 = vmul.f32 %v432, %v440
    %v452 = vmul.f32 %v433, %v440
    %v453 = vmul.f32 %v434, %v440
    %v454 = vmul.f32 %v435, %v440
    %v455 = vmul.f32 %v436, %v440
    %v456 = vmul.f32 %v437, %v440
    %v457 = vmul.f32 %v438, %v440
    %v459 = vperm.slane %v78, 0
    %v461 = vadd.f32 %v442, %v459
    %v462 = vadd.f32 %v443, %v459
    %v463 = vadd.f32 %v444, %v459
    %v464 = vadd.f32 %v445, %v459
    %v465 = vadd.f32 %v446, %v459
    %v466 = vadd.f32 %v447, %v459
    %v467 = vadd.f32 %v448, %v459
    %v468 = vadd.f32 %v449, %v459
    %v469 = vadd.f32 %v450, %v459
    %v470 = vadd.f32 %v451, %v459
    %v471 = vadd.f32 %v452, %v459
    %v472 = vadd.f32 %v453, %v459
    %v473 = vadd.f32 %v454, %v459
    %v474 = vadd.f32 %v455, %v459
    %v475 = vadd.f32 %v456, %v459
    %v476 = vadd.f32 %v457, %v459
    %v477 = vpack.c.bf16 %v462, %v461
    %v478 = vpack.c.bf16 %v464, %v463
    %v479 = vpack.c.bf16 %v466, %v465
    %v480 = vpack.c.bf16 %v468, %v467
    %v481 = vpack.c.bf16 %v470, %v469
    %v482 = vpack.c.bf16 %v472, %v471
    %v483 = vpack.c.bf16 %v474, %v473
    %v484 = vpack.c.bf16 %v476, %v475
    %v485 = vld [vmem:[%s3] sm:$0xf]
    %v486 = vld [vmem:[%s3 + $0x4] sm:$0xf]
    %v487 = vld [vmem:[%s3 + $0x8] sm:$0xf]
    %v488 = vld [vmem:[%s3 + $0xc] sm:$0xf]
    %v489 = vld [vmem:[%s4] sm:$0x1]
    %v491 = vperm.slane %v489, 0
    %v497 = vunpack.c.l.b16 %v485
    %v498 = vunpack.c.l.b16 %v486
    %v499 = vunpack.c.l.b16 %v487
    %v500 = vunpack.c.l.b16 %v488
    %v501 = vpack.c.b16 %v498, %v497
    %v502 = vpack.c.b16 %v500, %v499
    %v506 = vsel %vm79, %v477, 0
    %v509 = vsel %vm79, %v478, 0
    %v512 = vsel %vm79, %v479, 0
    %v515 = vsel %vm79, %v480, 0
    %v518 = vsel %vm79, %v481, 0
    %v521 = vsel %vm79, %v482, 0
    %v524 = vsel %vm79, %v483, 0
    %v527 = vsel %vm79, %v484, 0
    %529 = vmatpush.bf16.msra.mxu0 0
    %530 = vmatpush.bf16.msra.mxu0 0
    %531 = vmatpush.bf16.msra.mxu0 0
    %532 = vmatpush.bf16.msra.mxu0 0
    %533 = vmatpush.bf16.msra.mxu0 0
    %534 = vmatpush.bf16.msra.mxu0 0
    %535 = vmatpush.bf16.msra.mxu0 %v502
    %536 = vmatpush.bf16.msra.mxu0 %v501
    %537 = vmatmul.bf16.gmra.mxu0 %v506
    %v538 = vpop.f32.mrf.mxu0
    %v539 = vadd.f32 %v491, %v538
    %v540 = vpop.f32.mrf.mxu0
    %v541 = vadd.f32 %v491, %v540
    %542 = vmatmul.bf16.gmra.mxu0 %v509
    %v543 = vpop.f32.mrf.mxu0
    %v544 = vadd.f32 %v491, %v543
    %v545 = vpop.f32.mrf.mxu0
    %v546 = vadd.f32 %v491, %v545
    %547 = vmatmul.bf16.gmra.mxu0 %v512
    %v548 = vpop.f32.mrf.mxu0
    %v549 = vadd.f32 %v491, %v548
    %v550 = vpop.f32.mrf.mxu0
    %v551 = vadd.f32 %v491, %v550
    %552 = vmatmul.bf16.gmra.mxu0 %v515
    %v553 = vpop.f32.mrf.mxu0
    %v554 = vadd.f32 %v491, %v553
    %v555 = vpop.f32.mrf.mxu0
    %v556 = vadd.f32 %v491, %v555
    %557 = vmatmul.bf16.gmra.mxu0 %v518
    %v558 = vpop.f32.mrf.mxu0
    %v559 = vadd.f32 %v491, %v558
    %v560 = vpop.f32.mrf.mxu0
    %v561 = vadd.f32 %v491, %v560
    %562 = vmatmul.bf16.gmra.mxu0 %v521
    %v563 = vpop.f32.mrf.mxu0
    %v564 = vadd.f32 %v491, %v563
    %v565 = vpop.f32.mrf.mxu0
    %v566 = vadd.f32 %v491, %v565
    %567 = vmatmul.bf16.gmra.mxu0 %v524
    %v568 = vpop.f32.mrf.mxu0
    %v569 = vadd.f32 %v491, %v568
    %v570 = vpop.f32.mrf.mxu0
    %v571 = vadd.f32 %v491, %v570
    %572 = vmatmul.bf16.gmra.mxu0 %v527
    %v573 = vpop.f32.mrf.mxu0
    %v574 = vadd.f32 %v491, %v573
    %v575 = vpop.f32.mrf.mxu0
    %v576 = vadd.f32 %v491, %v575
    %577 = vdwg.mxu0
    %v578 = vmul.f32 %v539, 0.5
    %v579 = vmul.f32 %v541, 0.5
    %v580 = vmul.f32 %v544, 0.5
    %v581 = vmul.f32 %v546, 0.5
    %v582 = vmul.f32 %v549, 0.5
    %v583 = vmul.f32 %v551, 0.5
    %v584 = vmul.f32 %v554, 0.5
    %v585 = vmul.f32 %v556, 0.5
    %v586 = vmul.f32 %v559, 0.5
    %v587 = vmul.f32 %v561, 0.5
    %v588 = vmul.f32 %v564, 0.5
    %v589 = vmul.f32 %v566, 0.5
    %v590 = vmul.f32 %v569, 0.5
    %v591 = vmul.f32 %v571, 0.5
    %v592 = vmul.f32 %v574, 0.5
    %v593 = vmul.f32 %v576, 0.5
    %v594 = vmul.f32 %v539, 0.70710677
    %v595 = vmul.f32 %v541, 0.70710677
    %v596 = vmul.f32 %v544, 0.70710677
    %v597 = vmul.f32 %v546, 0.70710677
    %v598 = vmul.f32 %v549, 0.70710677
    %v599 = vmul.f32 %v551, 0.70710677
    %v600 = vmul.f32 %v554, 0.70710677
    %v601 = vmul.f32 %v556, 0.70710677
    %v602 = vmul.f32 %v559, 0.70710677
    %v603 = vmul.f32 %v561, 0.70710677
    %v604 = vmul.f32 %v564, 0.70710677
    %v605 = vmul.f32 %v566, 0.70710677
    %v606 = vmul.f32 %v569, 0.70710677
    %v607 = vmul.f32 %v571, 0.70710677
    %v608 = vmul.f32 %v574, 0.70710677
    %v609 = vmul.f32 %v576, 0.70710677
    %v610 = vmul.f32 %v594, %v594
    %v611 = vmin.f32 16.0, %v610
    %v612 = vmul.f32 %v611, 2.1237322e-06
    %v613 = vadd.f32 %v612, 0.00028619796
    %v614 = vmul.f32 %v611, %v613
    %v615 = vadd.f32 %v614, 0.0036580483
    %v616 = vmul.f32 %v611, %v615
    %v617 = vadd.f32 %v616, 0.05243302
    %v618 = vmul.f32 %v611, %v617
    %v619 = vadd.f32 %v618, 0.18741608
    %v620 = vmul.f32 %v611, %v619
    %v621 = vadd.f32 %v620, 1.1283791
    %v622 = vmul.f32 %v594, %v621
    %v623 = vmul.f32 %v611, 3.8918573e-05
    %v624 = vadd.f32 %v623, 0.001143296
    %v625 = vmul.f32 %v611, %v624
    %v626 = vadd.f32 %v625, 0.014752088
    %v627 = vmul.f32 %v611, %v626
    %v628 = vadd.f32 %v627, 0.112945676
    %v629 = vmul.f32 %v611, %v628
    %v630 = vadd.f32 %v629, 0.4994258
    %v631 = vmul.f32 %v611, %v630
    %v632 = vadd.f32 %v631, 1.0
    %v633 = vrcp.pop %v632
    %v634 = vmul.f32 %v632, %v633
    %v635 = vsub.f32 1.0, %v634
    %v636 = vmul.f32 %v633, %v635
    %v637 = vadd.f32 %v633, %v636
    %vm638 = vweird.f32 %v632
    %vm639 = vweird.f32 %v633
    %vm640 = vmor %vm638, %vm639
    %v641 = vsel %vm640, %v633, %v637
    %v642 = vand.u32 2147483647, %v632
    %vm643 = vcmp.eq.f32.partialorder %v642, 8.507059e+37
    %v644 = vand.u32 %v632, 2147483648
    %v645 = vor.u32 1.1754944e-38, %v644
    %v646 = vsel %vm643, %v645, %v641
    %v647 = vmul.f32 %v622, %v646
    %v648 = vmin.f32 %v647, 1.0
    %v649 = vmax.f32 %v648, -1.0
    %v650 = vmul.f32 %v595, %v595
    %v651 = vmin.f32 16.0, %v650
    %v652 = vmul.f32 %v651, 2.1237322e-06
    %v653 = vadd.f32 %v652, 0.00028619796
    %v654 = vmul.f32 %v651, %v653
    %v655 = vadd.f32 %v654, 0.0036580483
    %v656 = vmul.f32 %v651, %v655
    %v657 = vadd.f32 %v656, 0.05243302
    %v658 = vmul.f32 %v651, %v657
    %v659 = vadd.f32 %v658, 0.18741608
    %v660 = vmul.f32 %v651, %v659
    %v661 = vadd.f32 %v660, 1.1283791
    %v662 = vmul.f32 %v595, %v661
    %v663 = vmul.f32 %v651, 3.8918573e-05
    %v664 = vadd.f32 %v663, 0.001143296
    %v665 = vmul.f32 %v651, %v664
    %v666 = vadd.f32 %v665, 0.014752088
    %v667 = vmul.f32 %v651, %v666
    %v668 = vadd.f32 %v667, 0.112945676
    %v669 = vmul.f32 %v651, %v668
    %v670 = vadd.f32 %v669, 0.4994258
    %v671 = vmul.f32 %v651, %v670
    %v672 = vadd.f32 %v671, 1.0
    %v673 = vrcp.pop %v672
    %v674 = vmul.f32 %v672, %v673
    %v675 = vsub.f32 1.0, %v674
    %v676 = vmul.f32 %v673, %v675
    %v677 = vadd.f32 %v673, %v676
    %vm678 = vweird.f32 %v672
    %vm679 = vweird.f32 %v673
    %vm680 = vmor %vm678, %vm679
    %v681 = vsel %vm680, %v673, %v677
    %v682 = vand.u32 2147483647, %v672
    %vm683 = vcmp.eq.f32.partialorder %v682, 8.507059e+37
    %v684 = vand.u32 %v672, 2147483648
    %v685 = vor.u32 1.1754944e-38, %v684
    %v686 = vsel %vm683, %v685, %v681
    %v687 = vmul.f32 %v662, %v686
    %v688 = vmin.f32 %v687, 1.0
    %v689 = vmax.f32 %v688, -1.0
    %v690 = vmul.f32 %v596, %v596
    %v691 = vmin.f32 16.0, %v690
    %v692 = vmul.f32 %v691, 2.1237322e-06
    %v693 = vadd.f32 %v692, 0.00028619796
    %v694 = vmul.f32 %v691, %v693
    %v695 = vadd.f32 %v694, 0.0036580483
    %v696 = vmul.f32 %v691, %v695
    %v697 = vadd.f32 %v696, 0.05243302
    %v698 = vmul.f32 %v691, %v697
    %v699 = vadd.f32 %v698, 0.18741608
    %v700 = vmul.f32 %v691, %v699
    %v701 = vadd.f32 %v700, 1.1283791
    %v702 = vmul.f32 %v596, %v701
    %v703 = vmul.f32 %v691, 3.8918573e-05
    %v704 = vadd.f32 %v703, 0.001143296
    %v705 = vmul.f32 %v691, %v704
    %v706 = vadd.f32 %v705, 0.014752088
    %v707 = vmul.f32 %v691, %v706
    %v708 = vadd.f32 %v707, 0.112945676
    %v709 = vmul.f32 %v691, %v708
    %v710 = vadd.f32 %v709, 0.4994258
    %v711 = vmul.f32 %v691, %v710
    %v712 = vadd.f32 %v711, 1.0
    %v713 = vrcp.pop %v712
    %v714 = vmul.f32 %v712, %v713
    %v715 = vsub.f32 1.0, %v714
    %v716 = vmul.f32 %v713, %v715
    %v717 = vadd.f32 %v713, %v716
    %vm718 = vweird.f32 %v712
    %vm719 = vweird.f32 %v713
    %vm720 = vmor %vm718, %vm719
    %v721 = vsel %vm720, %v713, %v717
    %v722 = vand.u32 2147483647, %v712
    %vm723 = vcmp.eq.f32.partialorder %v722, 8.507059e+37
    %v724 = vand.u32 %v712, 2147483648
    %v725 = vor.u32 1.1754944e-38, %v724
    %v726 = vsel %vm723, %v725, %v721
    %v727 = vmul.f32 %v702, %v726
    %v728 = vmin.f32 %v727, 1.0
    %v729 = vmax.f32 %v728, -1.0
    %v730 = vmul.f32 %v597, %v597
    %v731 = vmin.f32 16.0, %v730
    %v732 = vmul.f32 %v731, 2.1237322e-06
    %v733 = vadd.f32 %v732, 0.00028619796
    %v734 = vmul.f32 %v731, %v733
    %v735 = vadd.f32 %v734, 0.0036580483
    %v736 = vmul.f32 %v731, %v735
    %v737 = vadd.f32 %v736, 0.05243302
    %v738 = vmul.f32 %v731, %v737
    %v739 = vadd.f32 %v738, 0.18741608
    %v740 = vmul.f32 %v731, %v739
    %v741 = vadd.f32 %v740, 1.1283791
    %v742 = vmul.f32 %v597, %v741
    %v743 = vmul.f32 %v731, 3.8918573e-05
    %v744 = vadd.f32 %v743, 0.001143296
    %v745 = vmul.f32 %v731, %v744
    %v746 = vadd.f32 %v745, 0.014752088
    %v747 = vmul.f32 %v731, %v746
    %v748 = vadd.f32 %v747, 0.112945676
    %v749 = vmul.f32 %v731, %v748
    %v750 = vadd.f32 %v749, 0.4994258
    %v751 = vmul.f32 %v731, %v750
    %v752 = vadd.f32 %v751, 1.0
    %v753 = vrcp.pop %v752
    %v754 = vmul.f32 %v752, %v753
    %v755 = vsub.f32 1.0, %v754
    %v756 = vmul.f32 %v753, %v755
    %v757 = vadd.f32 %v753, %v756
    %vm758 = vweird.f32 %v752
    %vm759 = vweird.f32 %v753
    %vm760 = vmor %vm758, %vm759
    %v761 = vsel %vm760, %v753, %v757
    %v762 = vand.u32 2147483647, %v752
    %vm763 = vcmp.eq.f32.partialorder %v762, 8.507059e+37
    %v764 = vand.u32 %v752, 2147483648
    %v765 = vor.u32 1.1754944e-38, %v764
    %v766 = vsel %vm763, %v765, %v761
    %v767 = vmul.f32 %v742, %v766
    %v768 = vmin.f32 %v767, 1.0
    %v769 = vmax.f32 %v768, -1.0
    %v770 = vmul.f32 %v598, %v598
    %v771 = vmin.f32 16.0, %v770
    %v772 = vmul.f32 %v771, 2.1237322e-06
    %v773 = vadd.f32 %v772, 0.00028619796
    %v774 = vmul.f32 %v771, %v773
    %v775 = vadd.f32 %v774, 0.0036580483
    %v776 = vmul.f32 %v771, %v775
    %v777 = vadd.f32 %v776, 0.05243302
    %v778 = vmul.f32 %v771, %v777
    %v779 = vadd.f32 %v778, 0.18741608
    %v780 = vmul.f32 %v771, %v779
    %v781 = vadd.f32 %v780, 1.1283791
    %v782 = vmul.f32 %v598, %v781
    %v783 = vmul.f32 %v771, 3.8918573e-05
    %v784 = vadd.f32 %v783, 0.001143296
    %v785 = vmul.f32 %v771, %v784
    %v786 = vadd.f32 %v785, 0.014752088
    %v787 = vmul.f32 %v771, %v786
    %v788 = vadd.f32 %v787, 0.112945676
    %v789 = vmul.f32 %v771, %v788
    %v790 = vadd.f32 %v789, 0.4994258
    %v791 = vmul.f32 %v771, %v790
    %v792 = vadd.f32 %v791, 1.0
    %v793 = vrcp.pop %v792
    %v794 = vmul.f32 %v792, %v793
    %v795 = vsub.f32 1.0, %v794
    %v796 = vmul.f32 %v793, %v795
    %v797 = vadd.f32 %v793, %v796
    %vm798 = vweird.f32 %v792
    %vm799 = vweird.f32 %v793
    %vm800 = vmor %vm798, %vm799
    %v801 = vsel %vm800, %v793, %v797
    %v802 = vand.u32 2147483647, %v792
    %vm803 = vcmp.eq.f32.partialorder %v802, 8.507059e+37
    %v804 = vand.u32 %v792, 2147483648
    %v805 = vor.u32 1.1754944e-38, %v804
    %v806 = vsel %vm803, %v805, %v801
    %v807 = vmul.f32 %v782, %v806
    %v808 = vmin.f32 %v807, 1.0
    %v809 = vmax.f32 %v808, -1.0
    %v810 = vmul.f32 %v599, %v599
    %v811 = vmin.f32 16.0, %v810
    %v812 = vmul.f32 %v811, 2.1237322e-06
    %v813 = vadd.f32 %v812, 0.00028619796
    %v814 = vmul.f32 %v811, %v813
    %v815 = vadd.f32 %v814, 0.0036580483
    %v816 = vmul.f32 %v811, %v815
    %v817 = vadd.f32 %v816, 0.05243302
    %v818 = vmul.f32 %v811, %v817
    %v819 = vadd.f32 %v818, 0.18741608
    %v820 = vmul.f32 %v811, %v819
    %v821 = vadd.f32 %v820, 1.1283791
    %v822 = vmul.f32 %v599, %v821
    %v823 = vmul.f32 %v811, 3.8918573e-05
    %v824 = vadd.f32 %v823, 0.001143296
    %v825 = vmul.f32 %v811, %v824
    %v826 = vadd.f32 %v825, 0.014752088
    %v827 = vmul.f32 %v811, %v826
    %v828 = vadd.f32 %v827, 0.112945676
    %v829 = vmul.f32 %v811, %v828
    %v830 = vadd.f32 %v829, 0.4994258
    %v831 = vmul.f32 %v811, %v830
    %v832 = vadd.f32 %v831, 1.0
    %v833 = vrcp.pop %v832
    %v834 = vmul.f32 %v832, %v833
    %v835 = vsub.f32 1.0, %v834
    %v836 = vmul.f32 %v833, %v835
    %v837 = vadd.f32 %v833, %v836
    %vm838 = vweird.f32 %v832
    %vm839 = vweird.f32 %v833
    %vm840 = vmor %vm838, %vm839
    %v841 = vsel %vm840, %v833, %v837
    %v842 = vand.u32 2147483647, %v832
    %vm843 = vcmp.eq.f32.partialorder %v842, 8.507059e+37
    %v844 = vand.u32 %v832, 2147483648
    %v845 = vor.u32 1.1754944e-38, %v844
    %v846 = vsel %vm843, %v845, %v841
    %v847 = vmul.f32 %v822, %v846
    %v848 = vmin.f32 %v847, 1.0
    %v849 = vmax.f32 %v848, -1.0
    %v850 = vmul.f32 %v600, %v600
    %v851 = vmin.f32 16.0, %v850
    %v852 = vmul.f32 %v851, 2.1237322e-06
    %v853 = vadd.f32 %v852, 0.00028619796
    %v854 = vmul.f32 %v851, %v853
    %v855 = vadd.f32 %v854, 0.0036580483
    %v856 = vmul.f32 %v851, %v855
    %v857 = vadd.f32 %v856, 0.05243302
    %v858 = vmul.f32 %v851, %v857
    %v859 = vadd.f32 %v858, 0.18741608
    %v860 = vmul.f32 %v851, %v859
    %v861 = vadd.f32 %v860, 1.1283791
    %v862 = vmul.f32 %v600, %v861
    %v863 = vmul.f32 %v851, 3.8918573e-05
    %v864 = vadd.f32 %v863, 0.001143296
    %v865 = vmul.f32 %v851, %v864
    %v866 = vadd.f32 %v865, 0.014752088
    %v867 = vmul.f32 %v851, %v866
    %v868 = vadd.f32 %v867, 0.112945676
    %v869 = vmul.f32 %v851, %v868
    %v870 = vadd.f32 %v869, 0.4994258
    %v871 = vmul.f32 %v851, %v870
    %v872 = vadd.f32 %v871, 1.0
    %v873 = vrcp.pop %v872
    %v874 = vmul.f32 %v872, %v873
    %v875 = vsub.f32 1.0, %v874
    %v876 = vmul.f32 %v873, %v875
    %v877 = vadd.f32 %v873, %v876
    %vm878 = vweird.f32 %v872
    %vm879 = vweird.f32 %v873
    %vm880 = vmor %vm878, %vm879
    %v881 = vsel %vm880, %v873, %v877
    %v882 = vand.u32 2147483647, %v872
    %vm883 = vcmp.eq.f32.partialorder %v882, 8.507059e+37
    %v884 = vand.u32 %v872, 2147483648
    %v885 = vor.u32 1.1754944e-38, %v884
    %v886 = vsel %vm883, %v885, %v881
    %v887 = vmul.f32 %v862, %v886
    %v888 = vmin.f32 %v887, 1.0
    %v889 = vmax.f32 %v888, -1.0
    %v890 = vmul.f32 %v601, %v601
    %v891 = vmin.f32 16.0, %v890
    %v892 = vmul.f32 %v891, 2.1237322e-06
    %v893 = vadd.f32 %v892, 0.00028619796
    %v894 = vmul.f32 %v891, %v893
    %v895 = vadd.f32 %v894, 0.0036580483
    %v896 = vmul.f32 %v891, %v895
    %v897 = vadd.f32 %v896, 0.05243302
    %v898 = vmul.f32 %v891, %v897
    %v899 = vadd.f32 %v898, 0.18741608
    %v900 = vmul.f32 %v891, %v899
    %v901 = vadd.f32 %v900, 1.1283791
    %v902 = vmul.f32 %v601, %v901
    %v903 = vmul.f32 %v891, 3.8918573e-05
    %v904 = vadd.f32 %v903, 0.001143296
    %v905 = vmul.f32 %v891, %v904
    %v906 = vadd.f32 %v905, 0.014752088
    %v907 = vmul.f32 %v891, %v906
    %v908 = vadd.f32 %v907, 0.112945676
    %v909 = vmul.f32 %v891, %v908
    %v910 = vadd.f32 %v909, 0.4994258
    %v911 = vmul.f32 %v891, %v910
    %v912 = vadd.f32 %v911, 1.0
    %v913 = vrcp.pop %v912
    %v914 = vmul.f32 %v912, %v913
    %v915 = vsub.f32 1.0, %v914
    %v916 = vmul.f32 %v913, %v915
    %v917 = vadd.f32 %v913, %v916
    %vm918 = vweird.f32 %v912
    %vm919 = vweird.f32 %v913
    %vm920 = vmor %vm918, %vm919
    %v921 = vsel %vm920, %v913, %v917
    %v922 = vand.u32 2147483647, %v912
    %vm923 = vcmp.eq.f32.partialorder %v922, 8.507059e+37
    %v924 = vand.u32 %v912, 2147483648
    %v925 = vor.u32 1.1754944e-38, %v924
    %v926 = vsel %vm923, %v925, %v921
    %v927 = vmul.f32 %v902, %v926
    %v928 = vmin.f32 %v927, 1.0
    %v929 = vmax.f32 %v928, -1.0
    %v930 = vmul.f32 %v602, %v602
    %v931 = vmin.f32 16.0, %v930
    %v932 = vmul.f32 %v931, 2.1237322e-06
    %v933 = vadd.f32 %v932, 0.00028619796
    %v934 = vmul.f32 %v931, %v933
    %v935 = vadd.f32 %v934, 0.0036580483
    %v936 = vmul.f32 %v931, %v935
    %v937 = vadd.f32 %v936, 0.05243302
    %v938 = vmul.f32 %v931, %v937
    %v939 = vadd.f32 %v938, 0.18741608
    %v940 = vmul.f32 %v931, %v939
    %v941 = vadd.f32 %v940, 1.1283791
    %v942 = vmul.f32 %v602, %v941
    %v943 = vmul.f32 %v931, 3.8918573e-05
    %v944 = vadd.f32 %v943, 0.001143296
    %v945 = vmul.f32 %v931, %v944
    %v946 = vadd.f32 %v945, 0.014752088
    %v947 = vmul.f32 %v931, %v946
    %v948 = vadd.f32 %v947, 0.112945676
    %v949 = vmul.f32 %v931, %v948
    %v950 = vadd.f32 %v949, 0.4994258
    %v951 = vmul.f32 %v931, %v950
    %v952 = vadd.f32 %v951, 1.0
    %v953 = vrcp.pop %v952
    %v954 = vmul.f32 %v952, %v953
    %v955 = vsub.f32 1.0, %v954
    %v956 = vmul.f32 %v953, %v955
    %v957 = vadd.f32 %v953, %v956
    %vm958 = vweird.f32 %v952
    %vm959 = vweird.f32 %v953
    %vm960 = vmor %vm958, %vm959
    %v961 = vsel %vm960, %v953, %v957
    %v962 = vand.u32 2147483647, %v952
    %vm963 = vcmp.eq.f32.partialorder %v962, 8.507059e+37
    %v964 = vand.u32 %v952, 2147483648
    %v965 = vor.u32 1.1754944e-38, %v964
    %v966 = vsel %vm963, %v965, %v961
    %v967 = vmul.f32 %v942, %v966
    %v968 = vmin.f32 %v967, 1.0
    %v969 = vmax.f32 %v968, -1.0
    %v970 = vmul.f32 %v603, %v603
    %v971 = vmin.f32 16.0, %v970
    %v972 = vmul.f32 %v971, 2.1237322e-06
    %v973 = vadd.f32 %v972, 0.00028619796
    %v974 = vmul.f32 %v971, %v973
    %v975 = vadd.f32 %v974, 0.0036580483
    %v976 = vmul.f32 %v971, %v975
    %v977 = vadd.f32 %v976, 0.05243302
    %v978 = vmul.f32 %v971, %v977
    %v979 = vadd.f32 %v978, 0.18741608
    %v980 = vmul.f32 %v971, %v979
    %v981 = vadd.f32 %v980, 1.1283791
    %v982 = vmul.f32 %v603, %v981
    %v983 = vmul.f32 %v971, 3.8918573e-05
    %v984 = vadd.f32 %v983, 0.001143296
    %v985 = vmul.f32 %v971, %v984
    %v986 = vadd.f32 %v985, 0.014752088
    %v987 = vmul.f32 %v971, %v986
    %v988 = vadd.f32 %v987, 0.112945676
    %v989 = vmul.f32 %v971, %v988
    %v990 = vadd.f32 %v989, 0.4994258
    %v991 = vmul.f32 %v971, %v990
    %v992 = vadd.f32 %v991, 1.0
    %v993 = vrcp.pop %v992
    %v994 = vmul.f32 %v992, %v993
    %v995 = vsub.f32 1.0, %v994
    %v996 = vmul.f32 %v993, %v995
    %v997 = vadd.f32 %v993, %v996
    %vm998 = vweird.f32 %v992
    %vm999 = vweird.f32 %v993
    %vm1000 = vmor %vm998, %vm999
    %v1001 = vsel %vm1000, %v993, %v997
    %v1002 = vand.u32 2147483647, %v992
    %vm1003 = vcmp.eq.f32.partialorder %v1002, 8.507059e+37
    %v1004 = vand.u32 %v992, 2147483648
    %v1005 = vor.u32 1.1754944e-38, %v1004
    %v1006 = vsel %vm1003, %v1005, %v1001
    %v1007 = vmul.f32 %v982, %v1006
    %v1008 = vmin.f32 %v1007, 1.0
    %v1009 = vmax.f32 %v1008, -1.0
    %v1010 = vmul.f32 %v604, %v604
    %v1011 = vmin.f32 16.0, %v1010
    %v1012 = vmul.f32 %v1011, 2.1237322e-06
    %v1013 = vadd.f32 %v1012, 0.00028619796
    %v1014 = vmul.f32 %v1011, %v1013
    %v1015 = vadd.f32 %v1014, 0.0036580483
    %v1016 = vmul.f32 %v1011, %v1015
    %v1017 = vadd.f32 %v1016, 0.05243302
    %v1018 = vmul.f32 %v1011, %v1017
    %v1019 = vadd.f32 %v1018, 0.18741608
    %v1020 = vmul.f32 %v1011, %v1019
    %v1021 = vadd.f32 %v1020, 1.1283791
    %v1022 = vmul.f32 %v604, %v1021
    %v1023 = vmul.f32 %v1011, 3.8918573e-05
    %v1024 = vadd.f32 %v1023, 0.001143296
    %v1025 = vmul.f32 %v1011, %v1024
    %v1026 = vadd.f32 %v1025, 0.014752088
    %v1027 = vmul.f32 %v1011, %v1026
    %v1028 = vadd.f32 %v1027, 0.112945676
    %v1029 = vmul.f32 %v1011, %v1028
    %v1030 = vadd.f32 %v1029, 0.4994258
    %v1031 = vmul.f32 %v1011, %v1030
    %v1032 = vadd.f32 %v1031, 1.0
    %v1033 = vrcp.pop %v1032
    %v1034 = vmul.f32 %v1032, %v1033
    %v1035 = vsub.f32 1.0, %v1034
    %v1036 = vmul.f32 %v1033, %v1035
    %v1037 = vadd.f32 %v1033, %v1036
    %vm1038 = vweird.f32 %v1032
    %vm1039 = vweird.f32 %v1033
    %vm1040 = vmor %vm1038, %vm1039
    %v1041 = vsel %vm1040, %v1033, %v1037
    %v1042 = vand.u32 2147483647, %v1032
    %vm1043 = vcmp.eq.f32.partialorder %v1042, 8.507059e+37
    %v1044 = vand.u32 %v1032, 2147483648
    %v1045 = vor.u32 1.1754944e-38, %v1044
    %v1046 = vsel %vm1043, %v1045, %v1041
    %v1047 = vmul.f32 %v1022, %v1046
    %v1048 = vmin.f32 %v1047, 1.0
    %v1049 = vmax.f32 %v1048, -1.0
    %v1050 = vmul.f32 %v605, %v605
    %v1051 = vmin.f32 16.0, %v1050
    %v1052 = vmul.f32 %v1051, 2.1237322e-06
    %v1053 = vadd.f32 %v1052, 0.00028619796
    %v1054 = vmul.f32 %v1051, %v1053
    %v1055 = vadd.f32 %v1054, 0.0036580483
    %v1056 = vmul.f32 %v1051, %v1055
    %v1057 = vadd.f32 %v1056, 0.05243302
    %v1058 = vmul.f32 %v1051, %v1057
    %v1059 = vadd.f32 %v1058, 0.18741608
    %v1060 = vmul.f32 %v1051, %v1059
    %v1061 = vadd.f32 %v1060, 1.1283791
    %v1062 = vmul.f32 %v605, %v1061
    %v1063 = vmul.f32 %v1051, 3.8918573e-05
    %v1064 = vadd.f32 %v1063, 0.001143296
    %v1065 = vmul.f32 %v1051, %v1064
    %v1066 = vadd.f32 %v1065, 0.014752088
    %v1067 = vmul.f32 %v1051, %v1066
    %v1068 = vadd.f32 %v1067, 0.112945676
    %v1069 = vmul.f32 %v1051, %v1068
    %v1070 = vadd.f32 %v1069, 0.4994258
    %v1071 = vmul.f32 %v1051, %v1070
    %v1072 = vadd.f32 %v1071, 1.0
    %v1073 = vrcp.pop %v1072
    %v1074 = vmul.f32 %v1072, %v1073
    %v1075 = vsub.f32 1.0, %v1074
    %v1076 = vmul.f32 %v1073, %v1075
    %v1077 = vadd.f32 %v1073, %v1076
    %vm1078 = vweird.f32 %v1072
    %vm1079 = vweird.f32 %v1073
    %vm1080 = vmor %vm1078, %vm1079
    %v1081 = vsel %vm1080, %v1073, %v1077
    %v1082 = vand.u32 2147483647, %v1072
    %vm1083 = vcmp.eq.f32.partialorder %v1082, 8.507059e+37
    %v1084 = vand.u32 %v1072, 2147483648
    %v1085 = vor.u32 1.1754944e-38, %v1084
    %v1086 = vsel %vm1083, %v1085, %v1081
    %v1087 = vmul.f32 %v1062, %v1086
    %v1088 = vmin.f32 %v1087, 1.0
    %v1089 = vmax.f32 %v1088, -1.0
    %v1090 = vmul.f32 %v606, %v606
    %v1091 = vmin.f32 16.0, %v1090
    %v1092 = vmul.f32 %v1091, 2.1237322e-06
    %v1093 = vadd.f32 %v1092, 0.00028619796
    %v1094 = vmul.f32 %v1091, %v1093
    %v1095 = vadd.f32 %v1094, 0.0036580483
    %v1096 = vmul.f32 %v1091, %v1095
    %v1097 = vadd.f32 %v1096, 0.05243302
    %v1098 = vmul.f32 %v1091, %v1097
    %v1099 = vadd.f32 %v1098, 0.18741608
    %v1100 = vmul.f32 %v1091, %v1099
    %v1101 = vadd.f32 %v1100, 1.1283791
    %v1102 = vmul.f32 %v606, %v1101
    %v1103 = vmul.f32 %v1091, 3.8918573e-05
    %v1104 = vadd.f32 %v1103, 0.001143296
    %v1105 = vmul.f32 %v1091, %v1104
    %v1106 = vadd.f32 %v1105, 0.014752088
    %v1107 = vmul.f32 %v1091, %v1106
    %v1108 = vadd.f32 %v1107, 0.112945676
    %v1109 = vmul.f32 %v1091, %v1108
    %v1110 = vadd.f32 %v1109, 0.4994258
    %v1111 = vmul.f32 %v1091, %v1110
    %v1112 = vadd.f32 %v1111, 1.0
    %v1113 = vrcp.pop %v1112
    %v1114 = vmul.f32 %v1112, %v1113
    %v1115 = vsub.f32 1.0, %v1114
    %v1116 = vmul.f32 %v1113, %v1115
    %v1117 = vadd.f32 %v1113, %v1116
    %vm1118 = vweird.f32 %v1112
    %vm1119 = vweird.f32 %v1113
    %vm1120 = vmor %vm1118, %vm1119
    %v1121 = vsel %vm1120, %v1113, %v1117
    %v1122 = vand.u32 2147483647, %v1112
    %vm1123 = vcmp.eq.f32.partialorder %v1122, 8.507059e+37
    %v1124 = vand.u32 %v1112, 2147483648
    %v1125 = vor.u32 1.1754944e-38, %v1124
    %v1126 = vsel %vm1123, %v1125, %v1121
    %v1127 = vmul.f32 %v1102, %v1126
    %v1128 = vmin.f32 %v1127, 1.0
    %v1129 = vmax.f32 %v1128, -1.0
    %v1130 = vmul.f32 %v607, %v607
    %v1131 = vmin.f32 16.0, %v1130
    %v1132 = vmul.f32 %v1131, 2.1237322e-06
    %v1133 = vadd.f32 %v1132, 0.00028619796
    %v1134 = vmul.f32 %v1131, %v1133
    %v1135 = vadd.f32 %v1134, 0.0036580483
    %v1136 = vmul.f32 %v1131, %v1135
    %v1137 = vadd.f32 %v1136, 0.05243302
    %v1138 = vmul.f32 %v1131, %v1137
    %v1139 = vadd.f32 %v1138, 0.18741608
    %v1140 = vmul.f32 %v1131, %v1139
    %v1141 = vadd.f32 %v1140, 1.1283791
    %v1142 = vmul.f32 %v607, %v1141
    %v1143 = vmul.f32 %v1131, 3.8918573e-05
    %v1144 = vadd.f32 %v1143, 0.001143296
    %v1145 = vmul.f32 %v1131, %v1144
    %v1146 = vadd.f32 %v1145, 0.014752088
    %v1147 = vmul.f32 %v1131, %v1146
    %v1148 = vadd.f32 %v1147, 0.112945676
    %v1149 = vmul.f32 %v1131, %v1148
    %v1150 = vadd.f32 %v1149, 0.4994258
    %v1151 = vmul.f32 %v1131, %v1150
    %v1152 = vadd.f32 %v1151, 1.0
    %v1153 = vrcp.pop %v1152
    %v1154 = vmul.f32 %v1152, %v1153
    %v1155 = vsub.f32 1.0, %v1154
    %v1156 = vmul.f32 %v1153, %v1155
    %v1157 = vadd.f32 %v1153, %v1156
    %vm1158 = vweird.f32 %v1152
    %vm1159 = vweird.f32 %v1153
    %vm1160 = vmor %vm1158, %vm1159
    %v1161 = vsel %vm1160, %v1153, %v1157
    %v1162 = vand.u32 2147483647, %v1152
    %vm1163 = vcmp.eq.f32.partialorder %v1162, 8.507059e+37
    %v1164 = vand.u32 %v1152, 2147483648
    %v1165 = vor.u32 1.1754944e-38, %v1164
    %v1166 = vsel %vm1163, %v1165, %v1161
    %v1167 = vmul.f32 %v1142, %v1166
    %v1168 = vmin.f32 %v1167, 1.0
    %v1169 = vmax.f32 %v1168, -1.0
    %v1170 = vmul.f32 %v608, %v608
    %v1171 = vmin.f32 16.0, %v1170
    %v1172 = vmul.f32 %v1171, 2.1237322e-06
    %v1173 = vadd.f32 %v1172, 0.00028619796
    %v1174 = vmul.f32 %v1171, %v1173
    %v1175 = vadd.f32 %v1174, 0.0036580483
    %v1176 = vmul.f32 %v1171, %v1175
    %v1177 = vadd.f32 %v1176, 0.05243302
    %v1178 = vmul.f32 %v1171, %v1177
    %v1179 = vadd.f32 %v1178, 0.18741608
    %v1180 = vmul.f32 %v1171, %v1179
    %v1181 = vadd.f32 %v1180, 1.1283791
    %v1182 = vmul.f32 %v608, %v1181
    %v1183 = vmul.f32 %v1171, 3.8918573e-05
    %v1184 = vadd.f32 %v1183, 0.001143296
    %v1185 = vmul.f32 %v1171, %v1184
    %v1186 = vadd.f32 %v1185, 0.014752088
    %v1187 = vmul.f32 %v1171, %v1186
    %v1188 = vadd.f32 %v1187, 0.112945676
    %v1189 = vmul.f32 %v1171, %v1188
    %v1190 = vadd.f32 %v1189, 0.4994258
    %v1191 = vmul.f32 %v1171, %v1190
    %v1192 = vadd.f32 %v1191, 1.0
    %v1193 = vrcp.pop %v1192
    %v1194 = vmul.f32 %v1192, %v1193
    %v1195 = vsub.f32 1.0, %v1194
    %v1196 = vmul.f32 %v1193, %v1195
    %v1197 = vadd.f32 %v1193, %v1196
    %vm1198 = vweird.f32 %v1192
    %vm1199 = vweird.f32 %v1193
    %vm1200 = vmor %vm1198, %vm1199
    %v1201 = vsel %vm1200, %v1193, %v1197
    %v1202 = vand.u32 2147483647, %v1192
    %vm1203 = vcmp.eq.f32.partialorder %v1202, 8.507059e+37
    %v1204 = vand.u32 %v1192, 2147483648
    %v1205 = vor.u32 1.1754944e-38, %v1204
    %v1206 = vsel %vm1203, %v1205, %v1201
    %v1207 = vmul.f32 %v1182, %v1206
    %v1208 = vmin.f32 %v1207, 1.0
    %v1209 = vmax.f32 %v1208, -1.0
    %v1210 = vmul.f32 %v609, %v609
    %v1211 = vmin.f32 16.0, %v1210
    %v1212 = vmul.f32 %v1211, 2.1237322e-06
    %v1213 = vadd.f32 %v1212, 0.00028619796
    %v1214 = vmul.f32 %v1211, %v1213
    %v1215 = vadd.f32 %v1214, 0.0036580483
    %v1216 = vmul.f32 %v1211, %v1215
    %v1217 = vadd.f32 %v1216, 0.05243302
    %v1218 = vmul.f32 %v1211, %v1217
    %v1219 = vadd.f32 %v1218, 0.18741608
    %v1220 = vmul.f32 %v1211, %v1219
    %v1221 = vadd.f32 %v1220, 1.1283791
    %v1222 = vmul.f32 %v609, %v1221
    %v1223 = vmul.f32 %v1211, 3.8918573e-05
    %v1224 = vadd.f32 %v1223, 0.001143296
    %v1225 = vmul.f32 %v1211, %v1224
    %v1226 = vadd.f32 %v1225, 0.014752088
    %v1227 = vmul.f32 %v1211, %v1226
    %v1228 = vadd.f32 %v1227, 0.112945676
    %v1229 = vmul.f32 %v1211, %v1228
    %v1230 = vadd.f32 %v1229, 0.4994258
    %v1231 = vmul.f32 %v1211, %v1230
    %v1232 = vadd.f32 %v1231, 1.0
    %v1233 = vrcp.pop %v1232
    %v1234 = vmul.f32 %v1232, %v1233
    %v1235 = vsub.f32 1.0, %v1234
    %v1236 = vmul.f32 %v1233, %v1235
    %v1237 = vadd.f32 %v1233, %v1236
    %vm1238 = vweird.f32 %v1232
    %vm1239 = vweird.f32 %v1233
    %vm1240 = vmor %vm1238, %vm1239
    %v1241 = vsel %vm1240, %v1233, %v1237
    %v1242 = vand.u32 2147483647, %v1232
    %vm1243 = vcmp.eq.f32.partialorder %v1242, 8.507059e+37
    %v1244 = vand.u32 %v1232, 2147483648
    %v1245 = vor.u32 1.1754944e-38, %v1244
    %v1246 = vsel %vm1243, %v1245, %v1241
    %v1247 = vmul.f32 %v1222, %v1246
    %v1248 = vmin.f32 %v1247, 1.0
    %v1249 = vmax.f32 %v1248, -1.0
    %v1250 = vadd.f32 %v649, 1.0
    %v1251 = vadd.f32 %v689, 1.0
    %v1252 = vadd.f32 %v729, 1.0
    %v1253 = vadd.f32 %v769, 1.0
    %v1254 = vadd.f32 %v809, 1.0
    %v1255 = vadd.f32 %v849, 1.0
    %v1256 = vadd.f32 %v889, 1.0
    %v1257 = vadd.f32 %v929, 1.0
    %v1258 = vadd.f32 %v969, 1.0
    %v1259 = vadd.f32 %v1009, 1.0
    %v1260 = vadd.f32 %v1049, 1.0
    %v1261 = vadd.f32 %v1089, 1.0
    %v1262 = vadd.f32 %v1129, 1.0
    %v1263 = vadd.f32 %v1169, 1.0
    %v1264 = vadd.f32 %v1209, 1.0
    %v1265 = vadd.f32 %v1249, 1.0
    %v1266 = vmul.f32 %v578, %v1250
    %v1267 = vmul.f32 %v579, %v1251
    %v1268 = vmul.f32 %v580, %v1252
    %v1269 = vmul.f32 %v581, %v1253
    %v1270 = vmul.f32 %v582, %v1254
    %v1271 = vmul.f32 %v583, %v1255
    %v1272 = vmul.f32 %v584, %v1256
    %v1273 = vmul.f32 %v585, %v1257
    %v1274 = vmul.f32 %v586, %v1258
    %v1275 = vmul.f32 %v587, %v1259
    %v1276 = vmul.f32 %v588, %v1260
    %v1277 = vmul.f32 %v589, %v1261
    %v1278 = vmul.f32 %v590, %v1262
    %v1279 = vmul.f32 %v591, %v1263
    %v1280 = vmul.f32 %v592, %v1264
    %v1281 = vmul.f32 %v593, %v1265
    %v1282 = vld [vmem:[#allocation2] sm:$0xff]
    %v1283 = vld [vmem:[#allocation2 + $0x8] sm:$0xff]
    %v1284 = vld [vmem:[#allocation2 + $0x10] sm:$0xff]
    %v1285 = vld [vmem:[#allocation2 + $0x18] sm:$0xff]
    %v1286 = vld [vmem:[#allocation2 + $0x20] sm:$0xff]
    %v1287 = vld [vmem:[#allocation2 + $0x28] sm:$0xff]
    %v1288 = vld [vmem:[#allocation2 + $0x30] sm:$0xff]
    %v1289 = vld [vmem:[#allocation2 + $0x38] sm:$0xff]
    %v1290 = vld [vmem:[#allocation2 + $0x40] sm:$0xff]
    %v1291 = vld [vmem:[#allocation2 + $0x48] sm:$0xff]
    %v1292 = vld [vmem:[#allocation2 + $0x50] sm:$0xff]
    %v1293 = vld [vmem:[#allocation2 + $0x58] sm:$0xff]
    %v1294 = vld [vmem:[#allocation2 + $0x60] sm:$0xff]
    %v1295 = vld [vmem:[#allocation2 + $0x68] sm:$0xff]
    %v1296 = vld [vmem:[#allocation2 + $0x70] sm:$0xff]
    %v1297 = vld [vmem:[#allocation2 + $0x78] sm:$0xff]
    %v1298 = vpack.c.bf16 %v1267, %v1266
    %v1299 = vpack.c.bf16 %v1269, %v1268
    %v1300 = vpack.c.bf16 %v1271, %v1270
    %v1301 = vpack.c.bf16 %v1273, %v1272
    %v1302 = vpack.c.bf16 %v1275, %v1274
    %v1303 = vpack.c.bf16 %v1277, %v1276
    %v1304 = vpack.c.bf16 %v1279, %v1278
    %v1305 = vpack.c.bf16 %v1281, %v1280
    %v1306 = vld [vmem:[%s5] sm:$0xf]
    %v1307 = vld [vmem:[%s5 + $0x4] sm:$0xf]
    %v1308 = vld [vmem:[%s5 + $0x8] sm:$0xf]
    %v1309 = vld [vmem:[%s5 + $0xc] sm:$0xf]
    %v1310 = vld [vmem:[%s5 + $0x10] sm:$0xf]
    %v1311 = vld [vmem:[%s5 + $0x14] sm:$0xf]
    %v1312 = vld [vmem:[%s5 + $0x18] sm:$0xf]
    %v1313 = vld [vmem:[%s5 + $0x1c] sm:$0xf]
    %v1314 = vld [vmem:[%s5 + $0x20] sm:$0xf]
    %v1315 = vld [vmem:[%s5 + $0x24] sm:$0xf]
    %v1316 = vld [vmem:[%s5 + $0x28] sm:$0xf]
    %v1317 = vld [vmem:[%s5 + $0x2c] sm:$0xf]
    %v1318 = vld [vmem:[%s5 + $0x30] sm:$0xf]
    %v1319 = vld [vmem:[%s5 + $0x34] sm:$0xf]
    %v1320 = vld [vmem:[%s5 + $0x38] sm:$0xf]
    %v1321 = vld [vmem:[%s5 + $0x3c] sm:$0xf]
    %v1338 = vunpack.c.l.b16 %v1306
    %v1339 = vunpack.c.l.b16 %v1307
    %v1340 = vunpack.c.l.b16 %v1308
    %v1341 = vunpack.c.l.b16 %v1309
    %v1342 = vunpack.c.l.b16 %v1310
    %v1343 = vunpack.c.l.b16 %v1311
    %v1344 = vunpack.c.l.b16 %v1312
    %v1345 = vunpack.c.l.b16 %v1313
    %v1346 = vunpack.c.l.b16 %v1314
    %v1347 = vunpack.c.l.b16 %v1315
    %v1348 = vunpack.c.l.b16 %v1316
    %v1349 = vunpack.c.l.b16 %v1317
    %v1350 = vunpack.c.l.b16 %v1318
    %v1351 = vunpack.c.l.b16 %v1319
    %v1352 = vunpack.c.l.b16 %v1320
    %v1353 = vunpack.c.l.b16 %v1321
    %v1354 = vpack.c.b16 %v1339, %v1338
    %v1355 = vpack.c.b16 %v1341, %v1340
    %v1356 = vpack.c.b16 %v1343, %v1342
    %v1357 = vpack.c.b16 %v1345, %v1344
    %v1358 = vpack.c.b16 %v1347, %v1346
    %v1359 = vpack.c.b16 %v1349, %v1348
    %v1360 = vpack.c.b16 %v1351, %v1350
    %v1361 = vpack.c.b16 %v1353, %v1352
    %1370 = vmatpush.bf16.msra.mxu0 %v1361
    %1371 = vmatpush.bf16.msra.mxu0 %v1360
    %1372 = vmatpush.bf16.msra.mxu0 %v1359
    %1373 = vmatpush.bf16.msra.mxu0 %v1358
    %1374 = vmatpush.bf16.msra.mxu0 %v1357
    %1375 = vmatpush.bf16.msra.mxu0 %v1356
    %1376 = vmatpush.bf16.msra.mxu0 %v1355
    %1377 = vmatpush.bf16.msra.mxu0 %v1354
    %1378 = vmatmul.bf16.gmra.mxu0 %v1298
    %v1379 = vpop.f32.mrf.mxu0
    %v1380 = vadd.f32 0.0, %v1379
    %v1381 = vpop.f32.mrf.mxu0
    %v1382 = vadd.f32 0.0, %v1381
    %1383 = vmatmul.bf16.gmra.mxu0 %v1299
    %v1384 = vpop.f32.mrf.mxu0
    %v1385 = vadd.f32 0.0, %v1384
    %v1386 = vpop.f32.mrf.mxu0
    %v1387 = vadd.f32 0.0, %v1386
    %1388 = vmatmul.bf16.gmra.mxu0 %v1300
    %v1389 = vpop.f32.mrf.mxu0
    %v1390 = vadd.f32 0.0, %v1389
    %v1391 = vpop.f32.mrf.mxu0
    %v1392 = vadd.f32 0.0, %v1391
    %1393 = vmatmul.bf16.gmra.mxu0 %v1301
    %v1394 = vpop.f32.mrf.mxu0
    %v1395 = vadd.f32 0.0, %v1394
    %v1396 = vpop.f32.mrf.mxu0
    %v1397 = vadd.f32 0.0, %v1396
    %1398 = vmatmul.bf16.gmra.mxu0 %v1302
    %v1399 = vpop.f32.mrf.mxu0
    %v1400 = vadd.f32 0.0, %v1399
    %v1401 = vpop.f32.mrf.mxu0
    %v1402 = vadd.f32 0.0, %v1401
    %1403 = vmatmul.bf16.gmra.mxu0 %v1303
    %v1404 = vpop.f32.mrf.mxu0
    %v1405 = vadd.f32 0.0, %v1404
    %v1406 = vpop.f32.mrf.mxu0
    %v1407 = vadd.f32 0.0, %v1406
    %1408 = vmatmul.bf16.gmra.mxu0 %v1304
    %v1409 = vpop.f32.mrf.mxu0
    %v1410 = vadd.f32 0.0, %v1409
    %v1411 = vpop.f32.mrf.mxu0
    %v1412 = vadd.f32 0.0, %v1411
    %1413 = vmatmul.bf16.gmra.mxu0 %v1305
    %v1414 = vpop.f32.mrf.mxu0
    %v1415 = vadd.f32 0.0, %v1414
    %v1416 = vpop.f32.mrf.mxu0
    %v1417 = vadd.f32 0.0, %v1416
    %1418 = vdwg.mxu0
    %v1419 = vadd.f32 %v1282, %v1380
    %v1420 = vadd.f32 %v1283, %v1382
    %v1421 = vadd.f32 %v1284, %v1385
    %v1422 = vadd.f32 %v1285, %v1387
    %v1423 = vadd.f32 %v1286, %v1390
    %v1424 = vadd.f32 %v1287, %v1392
    %v1425 = vadd.f32 %v1288, %v1395
    %v1426 = vadd.f32 %v1289, %v1397
    %v1427 = vadd.f32 %v1290, %v1400
    %v1428 = vadd.f32 %v1291, %v1402
    %v1429 = vadd.f32 %v1292, %v1405
    %v1430 = vadd.f32 %v1293, %v1407
    %v1431 = vadd.f32 %v1294, %v1410
    %v1432 = vadd.f32 %v1295, %v1412
    %v1433 = vadd.f32 %v1296, %v1415
    %v1434 = vadd.f32 %v1297, %v1417
    %1435 = vst.msk [vmem:[#allocation2] sm:$0xff] %vm79, %v1419
    %1436 = vst.msk [vmem:[#allocation2 + $0x8] sm:$0xff] %vm79, %v1420
    %1437 = vst.msk [vmem:[#allocation2 + $0x10] sm:$0xff] %vm79, %v1421
    %1438 = vst.msk [vmem:[#allocation2 + $0x18] sm:$0xff] %vm79, %v1422
    %1439 = vst.msk [vmem:[#allocation2 + $0x20] sm:$0xff] %vm79, %v1423
    %1440 = vst.msk [vmem:[#allocation2 + $0x28] sm:$0xff] %vm79, %v1424
    %1441 = vst.msk [vmem:[#allocation2 + $0x30] sm:$0xff] %vm79, %v1425
    %1442 = vst.msk [vmem:[#allocation2 + $0x38] sm:$0xff] %vm79, %v1426
    %1443 = vst.msk [vmem:[#allocation2 + $0x40] sm:$0xff] %vm79, %v1427
    %1444 = vst.msk [vmem:[#allocation2 + $0x48] sm:$0xff] %vm79, %v1428
    %1445 = vst.msk [vmem:[#allocation2 + $0x50] sm:$0xff] %vm79, %v1429
    %1446 = vst.msk [vmem:[#allocation2 + $0x58] sm:$0xff] %vm79, %v1430
    %1447 = vst.msk [vmem:[#allocation2 + $0x60] sm:$0xff] %vm79, %v1431
    %1448 = vst.msk [vmem:[#allocation2 + $0x68] sm:$0xff] %vm79, %v1432
    %1449 = vst.msk [vmem:[#allocation2 + $0x70] sm:$0xff] %vm79, %v1433
    %1450 = vst.msk [vmem:[#allocation2 + $0x78] sm:$0xff] %vm79, %v1434
    // Predicated region
    $region50: #{tpu_custom_call.1} parent=1 // pred_check
      %p1451 = pneg %p56
    $region51: #{tpu_custom_call.1} parent=1 // pred_check_branch
      %1453 = sbr.rel (%p1451) target = $region53
    $region52: #{tpu_custom_call.1} parent=1 // pred_region
      %v1454 = vld [vmem:[#allocation2] sm:$0xff]
      %v1455 = vld [vmem:[#allocation2 + $0x8] sm:$0xff]
      %v1456 = vld [vmem:[#allocation2 + $0x10] sm:$0xff]
      %v1457 = vld [vmem:[#allocation2 + $0x18] sm:$0xff]
      %v1458 = vld [vmem:[#allocation2 + $0x20] sm:$0xff]
      %v1459 = vld [vmem:[#allocation2 + $0x28] sm:$0xff]
      %v1460 = vld [vmem:[#allocation2 + $0x30] sm:$0xff]
      %v1461 = vld [vmem:[#allocation2 + $0x38] sm:$0xff]
      %v1462 = vld [vmem:[#allocation2 + $0x40] sm:$0xff]
      %v1463 = vld [vmem:[#allocation2 + $0x48] sm:$0xff]
      %v1464 = vld [vmem:[#allocation2 + $0x50] sm:$0xff]
      %v1465 = vld [vmem:[#allocation2 + $0x58] sm:$0xff]
      %v1466 = vld [vmem:[#allocation2 + $0x60] sm:$0xff]
      %v1467 = vld [vmem:[#allocation2 + $0x68] sm:$0xff]
      %v1468 = vld [vmem:[#allocation2 + $0x70] sm:$0xff]
      %v1469 = vld [vmem:[#allocation2 + $0x78] sm:$0xff]
      %v1470 = vadd.f32 %v40, %v1454
      %v1471 = vadd.f32 %v41, %v1455
      %v1472 = vadd.f32 %v42, %v1456
      %v1473 = vadd.f32 %v43, %v1457
      %v1474 = vadd.f32 %v44, %v1458
      %v1475 = vadd.f32 %v45, %v1459
      %v1476 = vadd.f32 %v46, %v1460
      %v1477 = vadd.f32 %v47, %v1461
      %v1478 = vadd.f32 %v48, %v1462
      %v1479 = vadd.f32 %v49, %v1463
      %v1480 = vadd.f32 %v50, %v1464
      %v1481 = vadd.f32 %v51, %v1465
      %v1482 = vadd.f32 %v52, %v1466
      %v1483 = vadd.f32 %v53, %v1467
      %v1484 = vadd.f32 %v54, %v1468
      %v1485 = vadd.f32 %v55, %v1469
      %v1486 = vld [vmem:[%s6] sm:$0x1]
      %v1488 = vperm.slane %v1486, 0
      %v1490 = vadd.f32 %v1470, %v1488
      %v1491 = vadd.f32 %v1471, %v1488
      %v1492 = vadd.f32 %v1472, %v1488
      %v1493 = vadd.f32 %v1473, %v1488
      %v1494 = vadd.f32 %v1474, %v1488
      %v1495 = vadd.f32 %v1475, %v1488
      %v1496 = vadd.f32 %v1476, %v1488
      %v1497 = vadd.f32 %v1477, %v1488
      %v1498 = vadd.f32 %v1478, %v1488
      %v1499 = vadd.f32 %v1479, %v1488
      %v1500 = vadd.f32 %v1480, %v1488
      %v1501 = vadd.f32 %v1481, %v1488
      %v1502 = vadd.f32 %v1482, %v1488
      %v1503 = vadd.f32 %v1483, %v1488
      %v1504 = vadd.f32 %v1484, %v1488
      %v1505 = vadd.f32 %v1485, %v1488
      %v1506 = vld [vmem:[%s7] sm:$0x1]
      %v1507 = vld [vmem:[%s8] sm:$0x1]
      %v1508 = vsel %vm79, %v1490, 0.0
      %1509 = vadd.xlane.f32.xlu0 %v1508
      %v1510 = vpop.xlane.xlu0 %1509
      %v1511 = vsel %vm79, %v1491, 0.0
      %1512 = vadd.xlane.f32.xlu0 %v1511
      %v1513 = vpop.xlane.xlu0 %1512
      %v1514 = vsel %vm79, %v1492, 0.0
      %1515 = vadd.xlane.f32.xlu0 %v1514
      %v1516 = vpop.xlane.xlu0 %1515
      %v1517 = vsel %vm79, %v1493, 0.0
      %1518 = vadd.xlane.f32.xlu0 %v1517
      %v1519 = vpop.xlane.xlu0 %1518
      %v1520 = vsel %vm79, %v1494, 0.0
      %1521 = vadd.xlane.f32.xlu0 %v1520
      %v1522 = vpop.xlane.xlu0 %1521
      %v1523 = vsel %vm79, %v1495, 0.0
      %1524 = vadd.xlane.f32.xlu0 %v1523
      %v1525 = vpop.xlane.xlu0 %1524
      %v1526 = vsel %vm79, %v1496, 0.0
      %1527 = vadd.xlane.f32.xlu0 %v1526
      %v1528 = vpop.xlane.xlu0 %1527
      %v1529 = vsel %vm79, %v1497, 0.0
      %1530 = vadd.xlane.f32.xlu0 %v1529
      %v1531 = vpop.xlane.xlu0 %1530
      %v1532 = vsel %vm79, %v1498, 0.0
      %1533 = vadd.xlane.f32.xlu0 %v1532
      %v1534 = vpop.xlane.xlu0 %1533
      %v1535 = vsel %vm79, %v1499, 0.0
      %1536 = vadd.xlane.f32.xlu0 %v1535
      %v1537 = vpop.xlane.xlu0 %1536
      %v1538 = vsel %vm79, %v1500, 0.0
      %1539 = vadd.xlane.f32.xlu0 %v1538
      %v1540 = vpop.xlane.xlu0 %1539
      %v1541 = vsel %vm79, %v1501, 0.0
      %1542 = vadd.xlane.f32.xlu0 %v1541
      %v1543 = vpop.xlane.xlu0 %1542
      %v1544 = vsel %vm79, %v1502, 0.0
      %1545 = vadd.xlane.f32.xlu0 %v1544
      %v1546 = vpop.xlane.xlu0 %1545
      %v1547 = vsel %vm79, %v1503, 0.0
      %1548 = vadd.xlane.f32.xlu0 %v1547
      %v1549 = vpop.xlane.xlu0 %1548
      %v1550 = vsel %vm79, %v1504, 0.0
      %1551 = vadd.xlane.f32.xlu0 %v1550
      %v1552 = vpop.xlane.xlu0 %1551
      %v1553 = vsel %vm79, %v1505, 0.0
      %1554 = vadd.xlane.f32.xlu0 %v1553
      %v1555 = vpop.xlane.xlu0 %1554
      %v1556 = vmul.f32 %v1510, %v134
      %v1557 = vmul.f32 %v1513, %v134
      %v1558 = vmul.f32 %v1516, %v134
      %v1559 = vmul.f32 %v1519, %v134
      %v1560 = vmul.f32 %v1522, %v134
      %v1561 = vmul.f32 %v1525, %v134
      %v1562 = vmul.f32 %v1528, %v134
      %v1563 = vmul.f32 %v1531, %v134
      %v1564 = vmul.f32 %v1534, %v134
      %v1565 = vmul.f32 %v1537, %v134
      %v1566 = vmul.f32 %v1540, %v134
      %v1567 = vmul.f32 %v1543, %v134
      %v1568 = vmul.f32 %v1546, %v134
      %v1569 = vmul.f32 %v1549, %v134
      %v1570 = vmul.f32 %v1552, %v134
      %v1571 = vmul.f32 %v1555, %v134
      %v1572 = vsub.f32 %v1490, %v1556
      %v1573 = vsub.f32 %v1491, %v1557
      %v1574 = vsub.f32 %v1492, %v1558
      %v1575 = vsub.f32 %v1493, %v1559
      %v1576 = vsub.f32 %v1494, %v1560
      %v1577 = vsub.f32 %v1495, %v1561
      %v1578 = vsub.f32 %v1496, %v1562
      %v1579 = vsub.f32 %v1497, %v1563
      %v1580 = vsub.f32 %v1498, %v1564
      %v1581 = vsub.f32 %v1499, %v1565
      %v1582 = vsub.f32 %v1500, %v1566
      %v1583 = vsub.f32 %v1501, %v1567
      %v1584 = vsub.f32 %v1502, %v1568
      %v1585 = vsub.f32 %v1503, %v1569
      %v1586 = vsub.f32 %v1504, %v1570
      %v1587 = vsub.f32 %v1505, %v1571
      %v1588 = vmul.f32 %v1572, %v1572
      %v1589 = vmul.f32 %v1573, %v1573
      %v1590 = vmul.f32 %v1574, %v1574
      %v1591 = vmul.f32 %v1575, %v1575
      %v1592 = vmul.f32 %v1576, %v1576
      %v1593 = vmul.f32 %v1577, %v1577
      %v1594 = vmul.f32 %v1578, %v1578
      %v1595 = vmul.f32 %v1579, %v1579
      %v1596 = vmul.f32 %v1580, %v1580
      %v1597 = vmul.f32 %v1581, %v1581
      %v1598 = vmul.f32 %v1582, %v1582
      %v1599 = vmul.f32 %v1583, %v1583
      %v1600 = vmul.f32 %v1584, %v1584
      %v1601 = vmul.f32 %v1585, %v1585
      %v1602 = vmul.f32 %v1586, %v1586
      %v1603 = vmul.f32 %v1587, %v1587
      %v1604 = vsel %vm79, %v1588, 0.0
      %1605 = vadd.xlane.f32.xlu0 %v1604
      %v1606 = vpop.xlane.xlu0 %1605
      %v1607 = vsel %vm79, %v1589, 0.0
      %1608 = vadd.xlane.f32.xlu0 %v1607
      %v1609 = vpop.xlane.xlu0 %1608
      %v1610 = vsel %vm79, %v1590, 0.0
      %1611 = vadd.xlane.f32.xlu0 %v1610
      %v1612 = vpop.xlane.xlu0 %1611
      %v1613 = vsel %vm79, %v1591, 0.0
      %1614 = vadd.xlane.f32.xlu0 %v1613
      %v1615 = vpop.xlane.xlu0 %1614
      %v1616 = vsel %vm79, %v1592, 0.0
      %1617 = vadd.xlane.f32.xlu0 %v1616
      %v1618 = vpop.xlane.xlu0 %1617
      %v1619 = vsel %vm79, %v1593, 0.0
      %1620 = vadd.xlane.f32.xlu0 %v1619
      %v1621 = vpop.xlane.xlu0 %1620
      %v1622 = vsel %vm79, %v1594, 0.0
      %1623 = vadd.xlane.f32.xlu0 %v1622
      %v1624 = vpop.xlane.xlu0 %1623
      %v1625 = vsel %vm79, %v1595, 0.0
      %1626 = vadd.xlane.f32.xlu0 %v1625
      %v1627 = vpop.xlane.xlu0 %1626
      %v1628 = vsel %vm79, %v1596, 0.0
      %1629 = vadd.xlane.f32.xlu0 %v1628
      %v1630 = vpop.xlane.xlu0 %1629
      %v1631 = vsel %vm79, %v1597, 0.0
      %1632 = vadd.xlane.f32.xlu0 %v1631
      %v1633 = vpop.xlane.xlu0 %1632
      %v1634 = vsel %vm79, %v1598, 0.0
      %1635 = vadd.xlane.f32.xlu0 %v1634
      %v1636 = vpop.xlane.xlu0 %1635
      %v1637 = vsel %vm79, %v1599, 0.0
      %1638 = vadd.xlane.f32.xlu0 %v1637
      %v1639 = vpop.xlane.xlu0 %1638
      %v1640 = vsel %vm79, %v1600, 0.0
      %1641 = vadd.xlane.f32.xlu0 %v1640
      %v1642 = vpop.xlane.xlu0 %1641
      %v1643 = vsel %vm79, %v1601, 0.0
      %1644 = vadd.xlane.f32.xlu0 %v1643
      %v1645 = vpop.xlane.xlu0 %1644
      %v1646 = vsel %vm79, %v1602, 0.0
      %1647 = vadd.xlane.f32.xlu0 %v1646
      %v1648 = vpop.xlane.xlu0 %1647
      %v1649 = vsel %vm79, %v1603, 0.0
      %1650 = vadd.xlane.f32.xlu0 %v1649
      %v1651 = vpop.xlane.xlu0 %1650
      %v1652 = vmul.f32 %v1606, %v134
      %v1653 = vmul.f32 %v1609, %v134
      %v1654 = vmul.f32 %v1612, %v134
      %v1655 = vmul.f32 %v1615, %v134
      %v1656 = vmul.f32 %v1618, %v134
      %v1657 = vmul.f32 %v1621, %v134
      %v1658 = vmul.f32 %v1624, %v134
      %v1659 = vmul.f32 %v1627, %v134
      %v1660 = vmul.f32 %v1630, %v134
      %v1661 = vmul.f32 %v1633, %v134
      %v1662 = vmul.f32 %v1636, %v134
      %v1663 = vmul.f32 %v1639, %v134
      %v1664 = vmul.f32 %v1642, %v134
      %v1665 = vmul.f32 %v1645, %v134
      %v1666 = vmul.f32 %v1648, %v134
      %v1667 = vmul.f32 %v1651, %v134
      %v1668 = vadd.f32 %v1652, 1e-05
      %v1669 = vadd.f32 %v1653, 1e-05
      %v1670 = vadd.f32 %v1654, 1e-05
      %v1671 = vadd.f32 %v1655, 1e-05
      %v1672 = vadd.f32 %v1656, 1e-05
      %v1673 = vadd.f32 %v1657, 1e-05
      %v1674 = vadd.f32 %v1658, 1e-05
      %v1675 = vadd.f32 %v1659, 1e-05
      %v1676 = vadd.f32 %v1660, 1e-05
      %v1677 = vadd.f32 %v1661, 1e-05
      %v1678 = vadd.f32 %v1662, 1e-05
      %v1679 = vadd.f32 %v1663, 1e-05
      %v1680 = vadd.f32 %v1664, 1e-05
      %v1681 = vadd.f32 %v1665, 1e-05
      %v1682 = vadd.f32 %v1666, 1e-05
      %v1683 = vadd.f32 %v1667, 1e-05
      %v1684 = vrsqrt.pop %v1668
      %v1685 = vmul.f32 %v1684, %v1668
      %v1686 = vmul.f32 %v1685, %v1684
      %v1687 = vmul.f32 0.5, %v1686
      %v1688 = vsub.f32 1.5, %v1687
      %v1689 = vmul.f32 %v1684, %v1688
      %vm1690 = vweird.f32 %v1668
      %vm1691 = vweird.f32 %v1684
      %vm1692 = vmor %vm1690, %vm1691
      %v1693 = vsel %vm1692, %v1684, %v1689
      %v1694 = vrsqrt.pop %v1669
      %v1695 = vmul.f32 %v1694, %v1669
      %v1696 = vmul.f32 %v1695, %v1694
      %v1697 = vmul.f32 0.5, %v1696
      %v1698 = vsub.f32 1.5, %v1697
      %v1699 = vmul.f32 %v1694, %v1698
      %vm1700 = vweird.f32 %v1669
      %vm1701 = vweird.f32 %v1694
      %vm1702 = vmor %vm1700, %vm1701
      %v1703 = vsel %vm1702, %v1694, %v1699
      %v1704 = vrsqrt.pop %v1670
      %v1705 = vmul.f32 %v1704, %v1670
      %v1706 = vmul.f32 %v1705, %v1704
      %v1707 = vmul.f32 0.5, %v1706
      %v1708 = vsub.f32 1.5, %v1707
      %v1709 = vmul.f32 %v1704, %v1708
      %vm1710 = vweird.f32 %v1670
      %vm1711 = vweird.f32 %v1704
      %vm1712 = vmor %vm1710, %vm1711
      %v1713 = vsel %vm1712, %v1704, %v1709
      %v1714 = vrsqrt.pop %v1671
      %v1715 = vmul.f32 %v1714, %v1671
      %v1716 = vmul.f32 %v1715, %v1714
      %v1717 = vmul.f32 0.5, %v1716
      %v1718 = vsub.f32 1.5, %v1717
      %v1719 = vmul.f32 %v1714, %v1718
      %vm1720 = vweird.f32 %v1671
      %vm1721 = vweird.f32 %v1714
      %vm1722 = vmor %vm1720, %vm1721
      %v1723 = vsel %vm1722, %v1714, %v1719
      %v1724 = vrsqrt.pop %v1672
      %v1725 = vmul.f32 %v1724, %v1672
      %v1726 = vmul.f32 %v1725, %v1724
      %v1727 = vmul.f32 0.5, %v1726
      %v1728 = vsub.f32 1.5, %v1727
      %v1729 = vmul.f32 %v1724, %v1728
      %vm1730 = vweird.f32 %v1672
      %vm1731 = vweird.f32 %v1724
      %vm1732 = vmor %vm1730, %vm1731
      %v1733 = vsel %vm1732, %v1724, %v1729
      %v1734 = vrsqrt.pop %v1673
      %v1735 = vmul.f32 %v1734, %v1673
      %v1736 = vmul.f32 %v1735, %v1734
      %v1737 = vmul.f32 0.5, %v1736
      %v1738 = vsub.f32 1.5, %v1737
      %v1739 = vmul.f32 %v1734, %v1738
      %vm1740 = vweird.f32 %v1673
      %vm1741 = vweird.f32 %v1734
      %vm1742 = vmor %vm1740, %vm1741
      %v1743 = vsel %vm1742, %v1734, %v1739
      %v1744 = vrsqrt.pop %v1674
      %v1745 = vmul.f32 %v1744, %v1674
      %v1746 = vmul.f32 %v1745, %v1744
      %v1747 = vmul.f32 0.5, %v1746
      %v1748 = vsub.f32 1.5, %v1747
      %v1749 = vmul.f32 %v1744, %v1748
      %vm1750 = vweird.f32 %v1674
      %vm1751 = vweird.f32 %v1744
      %vm1752 = vmor %vm1750, %vm1751
      %v1753 = vsel %vm1752, %v1744, %v1749
      %v1754 = vrsqrt.pop %v1675
      %v1755 = vmul.f32 %v1754, %v1675
      %v1756 = vmul.f32 %v1755, %v1754
      %v1757 = vmul.f32 0.5, %v1756
      %v1758 = vsub.f32 1.5, %v1757
      %v1759 = vmul.f32 %v1754, %v1758
      %vm1760 = vweird.f32 %v1675
      %vm1761 = vweird.f32 %v1754
      %vm1762 = vmor %vm1760, %vm1761
      %v1763 = vsel %vm1762, %v1754, %v1759
      %v1764 = vrsqrt.pop %v1676
      %v1765 = vmul.f32 %v1764, %v1676
      %v1766 = vmul.f32 %v1765, %v1764
      %v1767 = vmul.f32 0.5, %v1766
      %v1768 = vsub.f32 1.5, %v1767
      %v1769 = vmul.f32 %v1764, %v1768
      %vm1770 = vweird.f32 %v1676
      %vm1771 = vweird.f32 %v1764
      %vm1772 = vmor %vm1770, %vm1771
      %v1773 = vsel %vm1772, %v1764, %v1769
      %v1774 = vrsqrt.pop %v1677
      %v1775 = vmul.f32 %v1774, %v1677
      %v1776 = vmul.f32 %v1775, %v1774
      %v1777 = vmul.f32 0.5, %v1776
      %v1778 = vsub.f32 1.5, %v1777
      %v1779 = vmul.f32 %v1774, %v1778
      %vm1780 = vweird.f32 %v1677
      %vm1781 = vweird.f32 %v1774
      %vm1782 = vmor %vm1780, %vm1781
      %v1783 = vsel %vm1782, %v1774, %v1779
      %v1784 = vrsqrt.pop %v1678
      %v1785 = vmul.f32 %v1784, %v1678
      %v1786 = vmul.f32 %v1785, %v1784
      %v1787 = vmul.f32 0.5, %v1786
      %v1788 = vsub.f32 1.5, %v1787
      %v1789 = vmul.f32 %v1784, %v1788
      %vm1790 = vweird.f32 %v1678
      %vm1791 = vweird.f32 %v1784
      %vm1792 = vmor %vm1790, %vm1791
      %v1793 = vsel %vm1792, %v1784, %v1789
      %v1794 = vrsqrt.pop %v1679
      %v1795 = vmul.f32 %v1794, %v1679
      %v1796 = vmul.f32 %v1795, %v1794
      %v1797 = vmul.f32 0.5, %v1796
      %v1798 = vsub.f32 1.5, %v1797
      %v1799 = vmul.f32 %v1794, %v1798
      %vm1800 = vweird.f32 %v1679
      %vm1801 = vweird.f32 %v1794
      %vm1802 = vmor %vm1800, %vm1801
      %v1803 = vsel %vm1802, %v1794, %v1799
      %v1804 = vrsqrt.pop %v1680
      %v1805 = vmul.f32 %v1804, %v1680
      %v1806 = vmul.f32 %v1805, %v1804
      %v1807 = vmul.f32 0.5, %v1806
      %v1808 = vsub.f32 1.5, %v1807
      %v1809 = vmul.f32 %v1804, %v1808
      %vm1810 = vweird.f32 %v1680
      %vm1811 = vweird.f32 %v1804
      %vm1812 = vmor %vm1810, %vm1811
      %v1813 = vsel %vm1812, %v1804, %v1809
      %v1814 = vrsqrt.pop %v1681
      %v1815 = vmul.f32 %v1814, %v1681
      %v1816 = vmul.f32 %v1815, %v1814
      %v1817 = vmul.f32 0.5, %v1816
      %v1818 = vsub.f32 1.5, %v1817
      %v1819 = vmul.f32 %v1814, %v1818
      %vm1820 = vweird.f32 %v1681
      %vm1821 = vweird.f32 %v1814
      %vm1822 = vmor %vm1820, %vm1821
      %v1823 = vsel %vm1822, %v1814, %v1819
      %v1824 = vrsqrt.pop %v1682
      %v1825 = vmul.f32 %v1824, %v1682
      %v1826 = vmul.f32 %v1825, %v1824
      %v1827 = vmul.f32 0.5, %v1826
      %v1828 = vsub.f32 1.5, %v1827
      %v1829 = vmul.f32 %v1824, %v1828
      %vm1830 = vweird.f32 %v1682
      %vm1831 = vweird.f32 %v1824
      %vm1832 = vmor %vm1830, %vm1831
      %v1833 = vsel %vm1832, %v1824, %v1829
      %v1834 = vrsqrt.pop %v1683
      %v1835 = vmul.f32 %v1834, %v1683
      %v1836 = vmul.f32 %v1835, %v1834
      %v1837 = vmul.f32 0.5, %v1836
      %v1838 = vsub.f32 1.5, %v1837
      %v1839 = vmul.f32 %v1834, %v1838
      %vm1840 = vweird.f32 %v1683
      %vm1841 = vweird.f32 %v1834
      %vm1842 = vmor %vm1840, %vm1841
      %v1843 = vsel %vm1842, %v1834, %v1839
      %v1844 = vmul.f32 %v1572, %v1693
      %v1845 = vmul.f32 %v1573, %v1703
      %v1846 = vmul.f32 %v1574, %v1713
      %v1847 = vmul.f32 %v1575, %v1723
      %v1848 = vmul.f32 %v1576, %v1733
      %v1849 = vmul.f32 %v1577, %v1743
      %v1850 = vmul.f32 %v1578, %v1753
      %v1851 = vmul.f32 %v1579, %v1763
      %v1852 = vmul.f32 %v1580, %v1773
      %v1853 = vmul.f32 %v1581, %v1783
      %v1854 = vmul.f32 %v1582, %v1793
      %v1855 = vmul.f32 %v1583, %v1803
      %v1856 = vmul.f32 %v1584, %v1813
      %v1857 = vmul.f32 %v1585, %v1823
      %v1858 = vmul.f32 %v1586, %v1833
      %v1859 = vmul.f32 %v1587, %v1843
      %v1861 = vperm.slane %v1506, 0
      %v1863 = vmul.f32 %v1844, %v1861
      %v1864 = vmul.f32 %v1845, %v1861
      %v1865 = vmul.f32 %v1846, %v1861
      %v1866 = vmul.f32 %v1847, %v1861
      %v1867 = vmul.f32 %v1848, %v1861
      %v1868 = vmul.f32 %v1849, %v1861
      %v1869 = vmul.f32 %v1850, %v1861
      %v1870 = vmul.f32 %v1851, %v1861
      %v1871 = vmul.f32 %v1852, %v1861
      %v1872 = vmul.f32 %v1853, %v1861
      %v1873 = vmul.f32 %v1854, %v1861
      %v1874 = vmul.f32 %v1855, %v1861
      %v1875 = vmul.f32 %v1856, %v1861
      %v1876 = vmul.f32 %v1857, %v1861
      %v1877 = vmul.f32 %v1858, %v1861
      %v1878 = vmul.f32 %v1859, %v1861
      %v1880 = vperm.slane %v1507, 0
      %v1882 = vadd.f32 %v1863, %v1880
      %v1883 = vadd.f32 %v1864, %v1880
      %v1884 = vadd.f32 %v1865, %v1880
      %v1885 = vadd.f32 %v1866, %v1880
      %v1886 = vadd.f32 %v1867, %v1880
      %v1887 = vadd.f32 %v1868, %v1880
      %v1888 = vadd.f32 %v1869, %v1880
      %v1889 = vadd.f32 %v1870, %v1880
      %v1890 = vadd.f32 %v1871, %v1880
      %v1891 = vadd.f32 %v1872, %v1880
      %v1892 = vadd.f32 %v1873, %v1880
      %v1893 = vadd.f32 %v1874, %v1880
      %v1894 = vadd.f32 %v1875, %v1880
      %v1895 = vadd.f32 %v1876, %v1880
      %v1896 = vadd.f32 %v1877, %v1880
      %v1897 = vadd.f32 %v1878, %v1880
      %v1898 = vpack.c.bf16 %v1883, %v1882
      %v1899 = vpack.c.bf16 %v1885, %v1884
      %v1900 = vpack.c.bf16 %v1887, %v1886
      %v1901 = vpack.c.bf16 %v1889, %v1888
      %v1902 = vpack.c.bf16 %v1891, %v1890
      %v1903 = vpack.c.bf16 %v1893, %v1892
      %v1904 = vpack.c.bf16 %v1895, %v1894
      %v1905 = vpack.c.bf16 %v1897, %v1896
      %v1906 = vld [vmem:[%s9] sm:$0xf]
      %v1907 = vld [vmem:[%s9 + $0x4] sm:$0xf]
      %v1908 = vld [vmem:[%s9 + $0x8] sm:$0xf]
      %v1909 = vld [vmem:[%s9 + $0xc] sm:$0xf]
      %v1910 = vld [vmem:[%s10] sm:$0x1]
      %v1912 = vperm.slane %v1910, 0
      %v1918 = vunpack.c.l.b16 %v1906
      %v1919 = vunpack.c.l.b16 %v1907
      %v1920 = vunpack.c.l.b16 %v1908
      %v1921 = vunpack.c.l.b16 %v1909
      %v1922 = vpack.c.b16 %v1919, %v1918
      %v1923 = vpack.c.b16 %v1921, %v1920
      %v1927 = vsel %vm79, %v1898, 0
      %v1930 = vsel %vm79, %v1899, 0
      %v1933 = vsel %vm79, %v1900, 0
      %v1936 = vsel %vm79, %v1901, 0
      %v1939 = vsel %vm79, %v1902, 0
      %v1942 = vsel %vm79, %v1903, 0
      %v1945 = vsel %vm79, %v1904, 0
      %v1948 = vsel %vm79, %v1905, 0
      %1950 = vmatpush.bf16.msra.mxu0 0
      %1951 = vmatpush.bf16.msra.mxu0 0
      %1952 = vmatpush.bf16.msra.mxu0 0
      %1953 = vmatpush.bf16.msra.mxu0 0
      %1954 = vmatpush.bf16.msra.mxu0 0
      %1955 = vmatpush.bf16.msra.mxu0 0
      %1956 = vmatpush.bf16.msra.mxu0 %v1923
      %1957 = vmatpush.bf16.msra.mxu0 %v1922
      %1958 = vmatmul.bf16.gmra.mxu0 %v1927
      %v1959 = vpop.f32.mrf.mxu0
      %v1960 = vadd.f32 %v1912, %v1959
      %v1961 = vpop.f32.mrf.mxu0
      %v1962 = vadd.f32 %v1912, %v1961
      %1963 = vmatmul.bf16.gmra.mxu0 %v1930
      %v1964 = vpop.f32.mrf.mxu0
      %v1965 = vadd.f32 %v1912, %v1964
      %v1966 = vpop.f32.mrf.mxu0
      %v1967 = vadd.f32 %v1912, %v1966
      %1968 = vmatmul.bf16.gmra.mxu0 %v1933
      %v1969 = vpop.f32.mrf.mxu0
      %v1970 = vadd.f32 %v1912, %v1969
      %v1971 = vpop.f32.mrf.mxu0
      %v1972 = vadd.f32 %v1912, %v1971
      %1973 = vmatmul.bf16.gmra.mxu0 %v1936
      %v1974 = vpop.f32.mrf.mxu0
      %v1975 = vadd.f32 %v1912, %v1974
      %v1976 = vpop.f32.mrf.mxu0
      %v1977 = vadd.f32 %v1912, %v1976
      %1978 = vmatmul.bf16.gmra.mxu0 %v1939
      %v1979 = vpop.f32.mrf.mxu0
      %v1980 = vadd.f32 %v1912, %v1979
      %v1981 = vpop.f32.mrf.mxu0
      %v1982 = vadd.f32 %v1912, %v1981
      %1983 = vmatmul.bf16.gmra.mxu0 %v1942
      %v1984 = vpop.f32.mrf.mxu0
      %v1985 = vadd.f32 %v1912, %v1984
      %v1986 = vpop.f32.mrf.mxu0
      %v1987 = vadd.f32 %v1912, %v1986
      %1988 = vmatmul.bf16.gmra.mxu0 %v1945
      %v1989 = vpop.f32.mrf.mxu0
      %v1990 = vadd.f32 %v1912, %v1989
      %v1991 = vpop.f32.mrf.mxu0
      %v1992 = vadd.f32 %v1912, %v1991
      %1993 = vmatmul.bf16.gmra.mxu0 %v1948
      %v1994 = vpop.f32.mrf.mxu0
      %v1995 = vadd.f32 %v1912, %v1994
      %v1996 = vpop.f32.mrf.mxu0
      %v1997 = vadd.f32 %v1912, %v1996
      %1998 = vdwg.mxu0
      %1999 = vst [vmem:[#allocation3] sm:$0xff] %v1960
      %2000 = vst [vmem:[#allocation3 + $0x8] sm:$0xff] %v1962
      %2001 = vst [vmem:[#allocation3 + $0x10] sm:$0xff] %v1965
      %2002 = vst [vmem:[#allocation3 + $0x18] sm:$0xff] %v1967
      %2003 = vst [vmem:[#allocation3 + $0x20] sm:$0xff] %v1970
      %2004 = vst [vmem:[#allocation3 + $0x28] sm:$0xff] %v1972
      %2005 = vst [vmem:[#allocation3 + $0x30] sm:$0xff] %v1975
      %2006 = vst [vmem:[#allocation3 + $0x38] sm:$0xff] %v1977
      %2007 = vst [vmem:[#allocation3 + $0x40] sm:$0xff] %v1980
      %2008 = vst [vmem:[#allocation3 + $0x48] sm:$0xff] %v1982
      %2009 = vst [vmem:[#allocation3 + $0x50] sm:$0xff] %v1985
      %2010 = vst [vmem:[#allocation3 + $0x58] sm:$0xff] %v1987
      %2011 = vst [vmem:[#allocation3 + $0x60] sm:$0xff] %v1990
      %2012 = vst [vmem:[#allocation3 + $0x68] sm:$0xff] %v1992
      %2013 = vst [vmem:[#allocation3 + $0x70] sm:$0xff] %v1995
      %2014 = vst [vmem:[#allocation3 + $0x78] sm:$0xff] %v1997
    $region53: #{tpu_custom_call.1} parent=1 // pred_fallthru
      _
    // Predicated region
    $region54: #{tpu_custom_call.1} parent=1 // pred_check
      _
    $region55: #{tpu_custom_call.1} parent=1 // pred_check_branch
      %2016 = sbr.rel (0) target = $region57
    $region56: #{tpu_custom_call.1} parent=1 // pred_region
      %2018 = vsyncadd [#allocation4], 0
      %s2019 = sshll.u32 [#allocation3], 4
      %s2020 = int_to_ptr.vmem [resolvable:$true] %s2019
      %s2021 = sshll.u32 %s11, 4
      %s2022 = int_to_ptr.hbm [resolvable:$true] %s2021
      %2027 = dma.vmem_to_hbm [thread:$0]  %s2020, 2048, %s2022, [#allocation4], 128, 128, 8
    $region57: #{tpu_custom_call.1} parent=1 // pred_fallthru
      _
    // Predicated region
    $region58: #{tpu_custom_call.1} parent=1 // pred_check
      _
    $region59: #{tpu_custom_call.1} parent=1 // pred_check_branch
      %2029 = sbr.rel (0) target = $region61
    $region60: #{tpu_custom_call.1} parent=1 // pred_region
      %2031 = dma.done [#allocation4], 2048
    $region61: #{tpu_custom_call.1} parent=1 // pred_fallthru
      _
    %2032 = vsyncpa [#allocation4], 1

</llo_original>
